<compile_context>
chip_gen: v5e
topology: v5e:2x2
jax: 0.10.0
libtpu: 0.0.40
codegen_flags: <defaults>
</compile_context>

<pallas_src>
import functools

import numpy as np
import jax
import jax.numpy as jnp
from jax.experimental import pallas as pl
from jax.experimental.pallas import tpu as pltpu


def _round_up(x, m):
    return ((x + m - 1) // m) * m


def gru_kernel(x_ref, wih_ref, whh_ref, bih_ref, bhh_ref, h_out_ref, gi_ref):
    """Whole-sequence GRU in a single kernel invocation.

    x_ref     : (T*Bp, Ep)   time-major embedded input (batch padded to 8)
    wih_ref   : (Ep, 3*Hp)   input->hidden weights; gate g lives in lanes
                             [g*Hp, g*Hp + H), zero-padded elsewhere
    whh_ref   : (Hp, 3*Hp)   hidden->hidden weights, same lane layout
    bih_ref   : (1, 3*Hp)    input biases
    bhh_ref   : (1, 3*Hp)    hidden biases
    h_out_ref : (Bp, Hp)     final hidden state (padded)
    gi_ref    : (T*Bp, 3*Hp) VMEM scratch for the hoisted input projection
    """
    Bp, Hp = h_out_ref.shape
    T = x_ref.shape[0] // Bp

    # Hoisted input projection: one large MXU matmul, independent of h.
    gi_ref[...] = (
        jnp.dot(x_ref[...], wih_ref[...], preferred_element_type=jnp.float32)
        + bih_ref[...]
    )

    bhh = bhh_ref[...]

    def step(t, h):
        row = pl.multiple_of(t * Bp, Bp)
        gi = gi_ref[pl.ds(row, Bp), :]                       # (Bp, 3*Hp)
        # Single fused hidden-side matmul per step.
        gh = jnp.dot(h, whh_ref[...],
                     preferred_element_type=jnp.float32) + bhh
        # Gate slices are 128-lane-tile aligned (Hp is a multiple of 128).
        r = jax.nn.sigmoid(gi[:, 0 * Hp:1 * Hp] + gh[:, 0 * Hp:1 * Hp])
        z = jax.nn.sigmoid(gi[:, 1 * Hp:2 * Hp] + gh[:, 1 * Hp:2 * Hp])
        n = jnp.tanh(gi[:, 2 * Hp:3 * Hp] + r * gh[:, 2 * Hp:3 * Hp])
        return (1.0 - z) * n + z * h

    # Padded lanes/rows stay consistent: zero-padded weights/biases keep padded
    # hidden lanes at exactly 0 given h0 = 0, so real lanes are never polluted.
    h0 = jnp.zeros((Bp, Hp), jnp.float32)
    h_final = jax.lax.fori_loop(0, T, step, h0, unroll=True)
    h_out_ref[...] = h_final


def prepare_gru_params(w_ih, w_hh, b_ih, b_hh, nembed, nhid):
    """One-time re-layout of PyTorch GRU params into the kernel's padded layout.

    w_ih : (3*nhid, nembed)  torch GRU weight_ih_l0, gate order [r, z, n]
    w_hh : (3*nhid, nhid)    torch GRU weight_hh_l0
    b_ih, b_hh : (3*nhid,)
    """
    H, E = nhid, nembed
    Hp = _round_up(H, 128)
    Ep = _round_up(E, 128)

    wih3 = jnp.transpose(w_ih.reshape(3, H, E), (0, 2, 1))   # (3, E, H)
    whh3 = jnp.transpose(w_hh.reshape(3, H, H), (0, 2, 1))   # (3, H, H)

    wih_all = jnp.zeros((Ep, 3 * Hp), jnp.float32)
    whh_all = jnp.zeros((Hp, 3 * Hp), jnp.float32)
    bih_all = jnp.zeros((1, 3 * Hp), jnp.float32)
    bhh_all = jnp.zeros((1, 3 * Hp), jnp.float32)
    for g in range(3):
        wih_all = wih_all.at[:E, g * Hp:g * Hp + H].set(wih3[g])
        whh_all = whh_all.at[:H, g * Hp:g * Hp + H].set(whh3[g])
        bih_all = bih_all.at[0, g * Hp:g * Hp + H].set(b_ih[g * H:(g + 1) * H])
        bhh_all = bhh_all.at[0, g * Hp:g * Hp + H].set(b_hh[g * H:(g + 1) * H])
    return wih_all, whh_all, bih_all, bhh_all


@functools.partial(jax.jit, static_argnames=("nembed", "nhid"))
def rnn_context_encoder(ctx, emb_w, wih_all, whh_all, bih_all, bhh_all,
                        nembed, nhid):
    """Forward pass equivalent of RnnContextEncoder.forward.

    ctx : (T, B) int32 token ids (time-major, like nn.GRU).
    Returns ctx_h : (1, B, nhid) float32 (final GRU hidden state).
    """
    T, B = ctx.shape
    H, E = nhid, nembed
    Ep = wih_all.shape[0]
    Hp = wih_all.shape[1] // 3
    Bp = _round_up(max(B, 8), 8)

    # Embedding gather (plain-JAX glue), padded to the native (8, 128) tile.
    ctx_emb = emb_w[ctx].astype(jnp.float32)                       # (T, B, E)
    x = jnp.zeros((T, Bp, Ep), jnp.float32).at[:, :B, :E].set(ctx_emb)
    x = x.reshape(T * Bp, Ep)

    vmem_spec = pl.BlockSpec(memory_space=pltpu.MemorySpace.VMEM)
    h_pad = pl.pallas_call(
        gru_kernel,
        out_shape=jax.ShapeDtypeStruct((Bp, Hp), jnp.float32),
        in_specs=[vmem_spec] * 5,
        out_specs=vmem_spec,
        scratch_shapes=[pltpu.VMEM((T * Bp, 3 * Hp), jnp.float32)],
    )(x, wih_all, whh_all, bih_all, bhh_all)

    return h_pad[None, :B, :H]


def gru_reference(ctx, emb_w, w_ih, w_hh, b_ih, b_hh, nhid):
    """Pure-JAX reference matching torch.nn.GRU semantics (gate order r,z,n)."""
    ctx_emb = emb_w[ctx].astype(jnp.float32)   # (T, B, E)
    H = nhid
    w_ir, w_iz, w_in = (w_ih.reshape(3, H, -1)[g] for g in range(3))
    w_hr, w_hz, w_hn = (w_hh.reshape(3, H, H)[g] for g in range(3))
    b_ir, b_iz, b_in = (b_ih.reshape(3, H)[g] for g in range(3))
    b_hr, b_hz, b_hn = (b_hh.reshape(3, H)[g] for g in range(3))

    def step(h, x):
        r = jax.nn.sigmoid(x @ w_ir.T + b_ir + h @ w_hr.T + b_hr)
        z = jax.nn.sigmoid(x @ w_iz.T + b_iz + h @ w_hz.T + b_hz)
        n = jnp.tanh(x @ w_in.T + b_in + r * (h @ w_hn.T + b_hn))
        h_new = (1.0 - z) * n + z * h
        return h_new, None

    h0 = jnp.zeros((ctx_emb.shape[1], H), jnp.float32)
    h_final, _ = jax.lax.scan(step, h0, ctx_emb)
    return h_final[None]


if __name__ == "__main__":
    # Module hyperparameters (k and device_id are unused in forward).
    n = 20          # vocab size
    nembed = 32
    nhid = 32
    init_range = 0.1

    seq_len = 8
    batch = 2

    key = jax.random.PRNGKey(0)
    k_emb, k_ih, k_hh, k_ctx = jax.random.split(key, 4)

    # Deterministic parameter init matching the module's __init__:
    #   embedding & GRU weights ~ U(-init_range, init_range), biases = 0.
    emb_w = jax.random.uniform(k_emb, (n, nembed), jnp.float32,
                               -init_range, init_range)
    w_ih = jax.random.uniform(k_ih, (3 * nhid, nembed), jnp.float32,
                              -init_range, init_range)
    w_hh = jax.random.uniform(k_hh, (3 * nhid, nhid), jnp.float32,
                              -init_range, init_range)
    b_ih = jnp.zeros((3 * nhid,), jnp.float32)
    b_hh = jnp.zeros((3 * nhid,), jnp.float32)

    # One-time parameter re-layout (off the per-call critical path).
    wih_all, whh_all, bih_all, bhh_all = prepare_gru_params(
        w_ih, w_hh, b_ih, b_hh, nembed, nhid)

    # Input: token ids, shape (seq_len, batch) (time-major like nn.GRU).
    ctx = jax.random.randint(k_ctx, (seq_len, batch), 0, n, jnp.int32)

    ctx_h = rnn_context_encoder(ctx, emb_w, wih_all, whh_all, bih_all, bhh_all,
                                nembed, nhid)
    ctx_h = jax.block_until_ready(ctx_h)

    ref = jax.block_until_ready(
        gru_reference(ctx, emb_w, w_ih, w_hh, b_ih, b_hh, nhid))

    assert ctx_h.shape == (1, batch, nhid)
    np.testing.assert_allclose(np.asarray(ctx_h), np.asarray(ref),
                               rtol=1e-5, atol=1e-5)
    print("KERNEL_OK")
</pallas_src>

<mosaic_0001>
module attributes {stable_mosaic.version = 11 : i64} {
  func.func @gru_kernel(%arg0: memref<64x128xf32, #tpu.memory_space<vmem>>, %arg1: memref<128x384xf32, #tpu.memory_space<vmem>>, %arg2: memref<128x384xf32, #tpu.memory_space<vmem>>, %arg3: memref<1x384xf32, #tpu.memory_space<vmem>>, %arg4: memref<1x384xf32, #tpu.memory_space<vmem>>, %arg5: memref<8x128xf32, #tpu.memory_space<vmem>>, %arg6: memref<64x384xf32, #tpu.memory_space<vmem>>) attributes {dimension_semantics = [], scalar_prefetch = 0 : i64, scratch_operands = 1 : i64, tpu.core_type = #tpu.core_type<tc>} {
    %c0 = arith.constant 0 : index
    %c0_0 = arith.constant 0 : index
    %0 = vector.load %arg0[%c0, %c0_0] : memref<64x128xf32, #tpu.memory_space<vmem>>, vector<64x128xf32>
    %c0_1 = arith.constant 0 : index
    %c0_2 = arith.constant 0 : index
    %1 = vector.load %arg1[%c0_1, %c0_2] : memref<128x384xf32, #tpu.memory_space<vmem>>, vector<128x384xf32>
    %cst = arith.constant dense<0.000000e+00> : vector<64x384xf32>
    %2 = tpu.matmul %0, %1, %cst {dimension_numbers = #tpu.dot_dimension_numbers<[1], [0], [0], [1], [0, 0, 1, 1], [], []>} : vector<64x128xf32>, vector<128x384xf32>, vector<64x384xf32> -> vector<64x384xf32>
    %c0_3 = arith.constant 0 : index
    %c0_4 = arith.constant 0 : index
    %3 = vector.load %arg3[%c0_3, %c0_4] : memref<1x384xf32, #tpu.memory_space<vmem>>, vector<1x384xf32>
    %4 = vector.broadcast %3 : vector<1x384xf32> to vector<64x384xf32>
    %5 = arith.addf %2, %4 : vector<64x384xf32>
    %c0_5 = arith.constant 0 : index
    %c0_6 = arith.constant 0 : index
    %6 = vector.load %arg6[%c0_5, %c0_6] : memref<64x384xf32, #tpu.memory_space<vmem>>, vector<64x384xf32>
    tpu.vector_store %arg6[%c0_5, %c0_6], %5 {strides = array<i32>} : memref<64x384xf32, #tpu.memory_space<vmem>>, vector<64x384xf32>,
    %c0_7 = arith.constant 0 : index
    %c0_8 = arith.constant 0 : index
    %7 = vector.load %arg4[%c0_7, %c0_8] : memref<1x384xf32, #tpu.memory_space<vmem>>, vector<1x384xf32>
    %cst_9 = arith.constant 0.000000e+00 : f32
    %8 = vector.broadcast %cst_9 : f32 to vector<8x128xf32>
    %c0_i32 = arith.constant 0 : i32
    %c8_i32 = arith.constant 8 : i32
    %9 = arith.muli %c0_i32, %c8_i32 : i32
    %10 = tpu.assume_multiple %9, 8 : i32
    %11 = arith.index_cast %10 : i32 to index
    %c0_10 = arith.constant 0 : index
    %12 = vector.load %arg6[%11, %c0_10] : memref<64x384xf32, #tpu.memory_space<vmem>>, vector<8x384xf32>
    %c0_11 = arith.constant 0 : index
    %c0_12 = arith.constant 0 : index
    %13 = vector.load %arg2[%c0_11, %c0_12] : memref<128x384xf32, #tpu.memory_space<vmem>>, vector<128x384xf32>
    %cst_13 = arith.constant dense<0.000000e+00> : vector<8x384xf32>
    %14 = tpu.matmul %8, %13, %cst_13 {dimension_numbers = #tpu.dot_dimension_numbers<[1], [0], [0], [1], [0, 0, 1, 1], [], []>} : vector<8x128xf32>, vector<128x384xf32>, vector<8x384xf32> -> vector<8x384xf32>
    %15 = vector.broadcast %7 : vector<1x384xf32> to vector<8x384xf32>
    %16 = arith.addf %14, %15 : vector<8x384xf32>
    %17 = vector.extract_strided_slice %12 {offsets = [0, 0], sizes = [8, 128], strides = [1, 1]} : vector<8x384xf32> to vector<8x128xf32>
    %18 = vector.extract_strided_slice %16 {offsets = [0, 0], sizes = [8, 128], strides = [1, 1]} : vector<8x384xf32> to vector<8x128xf32>
    %19 = arith.addf %17, %18 : vector<8x128xf32>
    %20 = arith.negf %19 : vector<8x128xf32>
    %21 = math.exp %20 : vector<8x128xf32>
    %cst_14 = arith.constant 1.000000e+00 : f32
    %22 = vector.broadcast %cst_14 : f32 to vector<8x128xf32>
    %23 = arith.addf %22, %21 : vector<8x128xf32>
    %24 = arith.divf %22, %23 : vector<8x128xf32>
    %25 = vector.extract_strided_slice %12 {offsets = [0, 128], sizes = [8, 128], strides = [1, 1]} : vector<8x384xf32> to vector<8x128xf32>
    %26 = vector.extract_strided_slice %16 {offsets = [0, 128], sizes = [8, 128], strides = [1, 1]} : vector<8x384xf32> to vector<8x128xf32>
    %27 = arith.addf %25, %26 : vector<8x128xf32>
    %28 = arith.negf %27 : vector<8x128xf32>
    %29 = math.exp %28 : vector<8x128xf32>
    %cst_15 = arith.constant 1.000000e+00 : f32
    %30 = vector.broadcast %cst_15 : f32 to vector<8x128xf32>
    %31 = arith.addf %30, %29 : vector<8x128xf32>
    %32 = arith.divf %30, %31 : vector<8x128xf32>
    %33 = vector.extract_strided_slice %12 {offsets = [0, 256], sizes = [8, 128], strides = [1, 1]} : vector<8x384xf32> to vector<8x128xf32>
    %34 = vector.extract_strided_slice %16 {offsets = [0, 256], sizes = [8, 128], strides = [1, 1]} : vector<8x384xf32> to vector<8x128xf32>
    %35 = arith.mulf %24, %34 : vector<8x128xf32>
    %36 = arith.addf %33, %35 : vector<8x128xf32>
    %37 = math.tanh %36 : vector<8x128xf32>
    %cst_16 = arith.constant 1.000000e+00 : f32
    %38 = vector.broadcast %cst_16 : f32 to vector<8x128xf32>
    %39 = arith.subf %38, %32 : vector<8x128xf32>
    %40 = arith.mulf %39, %37 : vector<8x128xf32>
    %41 = arith.mulf %32, %8 : vector<8x128xf32>
    %42 = arith.addf %40, %41 : vector<8x128xf32>
    %c1_i32 = arith.constant 1 : i32
    %c8_i32_17 = arith.constant 8 : i32
    %43 = arith.muli %c1_i32, %c8_i32_17 : i32
    %44 = tpu.assume_multiple %43, 8 : i32
    %45 = arith.index_cast %44 : i32 to index
    %c0_18 = arith.constant 0 : index
    %46 = vector.load %arg6[%45, %c0_18] : memref<64x384xf32, #tpu.memory_space<vmem>>, vector<8x384xf32>
    %c0_19 = arith.constant 0 : index
    %c0_20 = arith.constant 0 : index
    %47 = vector.load %arg2[%c0_19, %c0_20] : memref<128x384xf32, #tpu.memory_space<vmem>>, vector<128x384xf32>
    %cst_21 = arith.constant dense<0.000000e+00> : vector<8x384xf32>
    %48 = tpu.matmul %42, %47, %cst_21 {dimension_numbers = #tpu.dot_dimension_numbers<[1], [0], [0], [1], [0, 0, 1, 1], [], []>} : vector<8x128xf32>, vector<128x384xf32>, vector<8x384xf32> -> vector<8x384xf32>
    %49 = vector.broadcast %7 : vector<1x384xf32> to vector<8x384xf32>
    %50 = arith.addf %48, %49 : vector<8x384xf32>
    %51 = vector.extract_strided_slice %46 {offsets = [0, 0], sizes = [8, 128], strides = [1, 1]} : vector<8x384xf32> to vector<8x128xf32>
    %52 = vector.extract_strided_slice %50 {offsets = [0, 0], sizes = [8, 128], strides = [1, 1]} : vector<8x384xf32> to vector<8x128xf32>
    %53 = arith.addf %51, %52 : vector<8x128xf32>
    %54 = arith.negf %53 : vector<8x128xf32>
    %55 = math.exp %54 : vector<8x128xf32>
    %cst_22 = arith.constant 1.000000e+00 : f32
    %56 = vector.broadcast %cst_22 : f32 to vector<8x128xf32>
    %57 = arith.addf %56, %55 : vector<8x128xf32>
    %58 = arith.divf %56, %57 : vector<8x128xf32>
    %59 = vector.extract_strided_slice %46 {offsets = [0, 128], sizes = [8, 128], strides = [1, 1]} : vector<8x384xf32> to vector<8x128xf32>
    %60 = vector.extract_strided_slice %50 {offsets = [0, 128], sizes = [8, 128], strides = [1, 1]} : vector<8x384xf32> to vector<8x128xf32>
    %61 = arith.addf %59, %60 : vector<8x128xf32>
    %62 = arith.negf %61 : vector<8x128xf32>
    %63 = math.exp %62 : vector<8x128xf32>
    %cst_23 = arith.constant 1.000000e+00 : f32
    %64 = vector.broadcast %cst_23 : f32 to vector<8x128xf32>
    %65 = arith.addf %64, %63 : vector<8x128xf32>
    %66 = arith.divf %64, %65 : vector<8x128xf32>
    %67 = vector.extract_strided_slice %46 {offsets = [0, 256], sizes = [8, 128], strides = [1, 1]} : vector<8x384xf32> to vector<8x128xf32>
    %68 = vector.extract_strided_slice %50 {offsets = [0, 256], sizes = [8, 128], strides = [1, 1]} : vector<8x384xf32> to vector<8x128xf32>
    %69 = arith.mulf %58, %68 : vector<8x128xf32>
    %70 = arith.addf %67, %69 : vector<8x128xf32>
    %71 = math.tanh %70 : vector<8x128xf32>
    %cst_24 = arith.constant 1.000000e+00 : f32
    %72 = vector.broadcast %cst_24 : f32 to vector<8x128xf32>
    %73 = arith.subf %72, %66 : vector<8x128xf32>
    %74 = arith.mulf %73, %71 : vector<8x128xf32>
    %75 = arith.mulf %66, %42 : vector<8x128xf32>
    %76 = arith.addf %74, %75 : vector<8x128xf32>
    %c2_i32 = arith.constant 2 : i32
    %c8_i32_25 = arith.constant 8 : i32
    %77 = arith.muli %c2_i32, %c8_i32_25 : i32
    %78 = tpu.assume_multiple %77, 8 : i32
    %79 = arith.index_cast %78 : i32 to index
    %c0_26 = arith.constant 0 : index
    %80 = vector.load %arg6[%79, %c0_26] : memref<64x384xf32, #tpu.memory_space<vmem>>, vector<8x384xf32>
    %c0_27 = arith.constant 0 : index
    %c0_28 = arith.constant 0 : index
    %81 = vector.load %arg2[%c0_27, %c0_28] : memref<128x384xf32, #tpu.memory_space<vmem>>, vector<128x384xf32>
    %cst_29 = arith.constant dense<0.000000e+00> : vector<8x384xf32>
    %82 = tpu.matmul %76, %81, %cst_29 {dimension_numbers = #tpu.dot_dimension_numbers<[1], [0], [0], [1], [0, 0, 1, 1], [], []>} : vector<8x128xf32>, vector<128x384xf32>, vector<8x384xf32> -> vector<8x384xf32>
    %83 = vector.broadcast %7 : vector<1x384xf32> to vector<8x384xf32>
    %84 = arith.addf %82, %83 : vector<8x384xf32>
    %85 = vector.extract_strided_slice %80 {offsets = [0, 0], sizes = [8, 128], strides = [1, 1]} : vector<8x384xf32> to vector<8x128xf32>
    %86 = vector.extract_strided_slice %84 {offsets = [0, 0], sizes = [8, 128], strides = [1, 1]} : vector<8x384xf32> to vector<8x128xf32>
    %87 = arith.addf %85, %86 : vector<8x128xf32>
    %88 = arith.negf %87 : vector<8x128xf32>
    %89 = math.exp %88 : vector<8x128xf32>
    %cst_30 = arith.constant 1.000000e+00 : f32
    %90 = vector.broadcast %cst_30 : f32 to vector<8x128xf32>
    %91 = arith.addf %90, %89 : vector<8x128xf32>
    %92 = arith.divf %90, %91 : vector<8x128xf32>
    %93 = vector.extract_strided_slice %80 {offsets = [0, 128], sizes = [8, 128], strides = [1, 1]} : vector<8x384xf32> to vector<8x128xf32>
    %94 = vector.extract_strided_slice %84 {offsets = [0, 128], sizes = [8, 128], strides = [1, 1]} : vector<8x384xf32> to vector<8x128xf32>
    %95 = arith.addf %93, %94 : vector<8x128xf32>
    %96 = arith.negf %95 : vector<8x128xf32>
    %97 = math.exp %96 : vector<8x128xf32>
    %cst_31 = arith.constant 1.000000e+00 : f32
    %98 = vector.broadcast %cst_31 : f32 to vector<8x128xf32>
    %99 = arith.addf %98, %97 : vector<8x128xf32>
    %100 = arith.divf %98, %99 : vector<8x128xf32>
    %101 = vector.extract_strided_slice %80 {offsets = [0, 256], sizes = [8, 128], strides = [1, 1]} : vector<8x384xf32> to vector<8x128xf32>
    %102 = vector.extract_strided_slice %84 {offsets = [0, 256], sizes = [8, 128], strides = [1, 1]} : vector<8x384xf32> to vector<8x128xf32>
    %103 = arith.mulf %92, %102 : vector<8x128xf32>
    %104 = arith.addf %101, %103 : vector<8x128xf32>
    %105 = math.tanh %104 : vector<8x128xf32>
    %cst_32 = arith.constant 1.000000e+00 : f32
    %106 = vector.broadcast %cst_32 : f32 to vector<8x128xf32>
    %107 = arith.subf %106, %100 : vector<8x128xf32>
    %108 = arith.mulf %107, %105 : vector<8x128xf32>
    %109 = arith.mulf %100, %76 : vector<8x128xf32>
    %110 = arith.addf %108, %109 : vector<8x128xf32>
    %c3_i32 = arith.constant 3 : i32
    %c8_i32_33 = arith.constant 8 : i32
    %111 = arith.muli %c3_i32, %c8_i32_33 : i32
    %112 = tpu.assume_multiple %111, 8 : i32
    %113 = arith.index_cast %112 : i32 to index
    %c0_34 = arith.constant 0 : index
    %114 = vector.load %arg6[%113, %c0_34] : memref<64x384xf32, #tpu.memory_space<vmem>>, vector<8x384xf32>
    %c0_35 = arith.constant 0 : index
    %c0_36 = arith.constant 0 : index
    %115 = vector.load %arg2[%c0_35, %c0_36] : memref<128x384xf32, #tpu.memory_space<vmem>>, vector<128x384xf32>
    %cst_37 = arith.constant dense<0.000000e+00> : vector<8x384xf32>
    %116 = tpu.matmul %110, %115, %cst_37 {dimension_numbers = #tpu.dot_dimension_numbers<[1], [0], [0], [1], [0, 0, 1, 1], [], []>} : vector<8x128xf32>, vector<128x384xf32>, vector<8x384xf32> -> vector<8x384xf32>
    %117 = vector.broadcast %7 : vector<1x384xf32> to vector<8x384xf32>
    %118 = arith.addf %116, %117 : vector<8x384xf32>
    %119 = vector.extract_strided_slice %114 {offsets = [0, 0], sizes = [8, 128], strides = [1, 1]} : vector<8x384xf32> to vector<8x128xf32>
    %120 = vector.extract_strided_slice %118 {offsets = [0, 0], sizes = [8, 128], strides = [1, 1]} : vector<8x384xf32> to vector<8x128xf32>
    %121 = arith.addf %119, %120 : vector<8x128xf32>
    %122 = arith.negf %121 : vector<8x128xf32>
    %123 = math.exp %122 : vector<8x128xf32>
    %cst_38 = arith.constant 1.000000e+00 : f32
    %124 = vector.broadcast %cst_38 : f32 to vector<8x128xf32>
    %125 = arith.addf %124, %123 : vector<8x128xf32>
    %126 = arith.divf %124, %125 : vector<8x128xf32>
    %127 = vector.extract_strided_slice %114 {offsets = [0, 128], sizes = [8, 128], strides = [1, 1]} : vector<8x384xf32> to vector<8x128xf32>
    %128 = vector.extract_strided_slice %118 {offsets = [0, 128], sizes = [8, 128], strides = [1, 1]} : vector<8x384xf32> to vector<8x128xf32>
    %129 = arith.addf %127, %128 : vector<8x128xf32>
    %130 = arith.negf %129 : vector<8x128xf32>
    %131 = math.exp %130 : vector<8x128xf32>
    %cst_39 = arith.constant 1.000000e+00 : f32
    %132 = vector.broadcast %cst_39 : f32 to vector<8x128xf32>
    %133 = arith.addf %132, %131 : vector<8x128xf32>
    %134 = arith.divf %132, %133 : vector<8x128xf32>
    %135 = vector.extract_strided_slice %114 {offsets = [0, 256], sizes = [8, 128], strides = [1, 1]} : vector<8x384xf32> to vector<8x128xf32>
    %136 = vector.extract_strided_slice %118 {offsets = [0, 256], sizes = [8, 128], strides = [1, 1]} : vector<8x384xf32> to vector<8x128xf32>
    %137 = arith.mulf %126, %136 : vector<8x128xf32>
    %138 = arith.addf %135, %137 : vector<8x128xf32>
    %139 = math.tanh %138 : vector<8x128xf32>
    %cst_40 = arith.constant 1.000000e+00 : f32
    %140 = vector.broadcast %cst_40 : f32 to vector<8x128xf32>
    %141 = arith.subf %140, %134 : vector<8x128xf32>
    %142 = arith.mulf %141, %139 : vector<8x128xf32>
    %143 = arith.mulf %134, %110 : vector<8x128xf32>
    %144 = arith.addf %142, %143 : vector<8x128xf32>
    %c4_i32 = arith.constant 4 : i32
    %c8_i32_41 = arith.constant 8 : i32
    %145 = arith.muli %c4_i32, %c8_i32_41 : i32
    %146 = tpu.assume_multiple %145, 8 : i32
    %147 = arith.index_cast %146 : i32 to index
    %c0_42 = arith.constant 0 : index
    %148 = vector.load %arg6[%147, %c0_42] : memref<64x384xf32, #tpu.memory_space<vmem>>, vector<8x384xf32>
    %c0_43 = arith.constant 0 : index
    %c0_44 = arith.constant 0 : index
    %149 = vector.load %arg2[%c0_43, %c0_44] : memref<128x384xf32, #tpu.memory_space<vmem>>, vector<128x384xf32>
    %cst_45 = arith.constant dense<0.000000e+00> : vector<8x384xf32>
    %150 = tpu.matmul %144, %149, %cst_45 {dimension_numbers = #tpu.dot_dimension_numbers<[1], [0], [0], [1], [0, 0, 1, 1], [], []>} : vector<8x128xf32>, vector<128x384xf32>, vector<8x384xf32> -> vector<8x384xf32>
    %151 = vector.broadcast %7 : vector<1x384xf32> to vector<8x384xf32>
    %152 = arith.addf %150, %151 : vector<8x384xf32>
    %153 = vector.extract_strided_slice %148 {offsets = [0, 0], sizes = [8, 128], strides = [1, 1]} : vector<8x384xf32> to vector<8x128xf32>
    %154 = vector.extract_strided_slice %152 {offsets = [0, 0], sizes = [8, 128], strides = [1, 1]} : vector<8x384xf32> to vector<8x128xf32>
    %155 = arith.addf %153, %154 : vector<8x128xf32>
    %156 = arith.negf %155 : vector<8x128xf32>
    %157 = math.exp %156 : vector<8x128xf32>
    %cst_46 = arith.constant 1.000000e+00 : f32
    %158 = vector.broadcast %cst_46 : f32 to vector<8x128xf32>
    %159 = arith.addf %158, %157 : vector<8x128xf32>
    %160 = arith.divf %158, %159 : vector<8x128xf32>
    %161 = vector.extract_strided_slice %148 {offsets = [0, 128], sizes = [8, 128], strides = [1, 1]} : vector<8x384xf32> to vector<8x128xf32>
    %162 = vector.extract_strided_slice %152 {offsets = [0, 128], sizes = [8, 128], strides = [1, 1]} : vector<8x384xf32> to vector<8x128xf32>
    %163 = arith.addf %161, %162 : vector<8x128xf32>
    %164 = arith.negf %163 : vector<8x128xf32>
    %165 = math.exp %164 : vector<8x128xf32>
    %cst_47 = arith.constant 1.000000e+00 : f32
    %166 = vector.broadcast %cst_47 : f32 to vector<8x128xf32>
    %167 = arith.addf %166, %165 : vector<8x128xf32>
    %168 = arith.divf %166, %167 : vector<8x128xf32>
    %169 = vector.extract_strided_slice %148 {offsets = [0, 256], sizes = [8, 128], strides = [1, 1]} : vector<8x384xf32> to vector<8x128xf32>
    %170 = vector.extract_strided_slice %152 {offsets = [0, 256], sizes = [8, 128], strides = [1, 1]} : vector<8x384xf32> to vector<8x128xf32>
    %171 = arith.mulf %160, %170 : vector<8x128xf32>
    %172 = arith.addf %169, %171 : vector<8x128xf32>
    %173 = math.tanh %172 : vector<8x128xf32>
    %cst_48 = arith.constant 1.000000e+00 : f32
    %174 = vector.broadcast %cst_48 : f32 to vector<8x128xf32>
    %175 = arith.subf %174, %168 : vector<8x128xf32>
    %176 = arith.mulf %175, %173 : vector<8x128xf32>
    %177 = arith.mulf %168, %144 : vector<8x128xf32>
    %178 = arith.addf %176, %177 : vector<8x128xf32>
    %c5_i32 = arith.constant 5 : i32
    %c8_i32_49 = arith.constant 8 : i32
    %179 = arith.muli %c5_i32, %c8_i32_49 : i32
    %180 = tpu.assume_multiple %179, 8 : i32
    %181 = arith.index_cast %180 : i32 to index
    %c0_50 = arith.constant 0 : index
    %182 = vector.load %arg6[%181, %c0_50] : memref<64x384xf32, #tpu.memory_space<vmem>>, vector<8x384xf32>
    %c0_51 = arith.constant 0 : index
    %c0_52 = arith.constant 0 : index
    %183 = vector.load %arg2[%c0_51, %c0_52] : memref<128x384xf32, #tpu.memory_space<vmem>>, vector<128x384xf32>
    %cst_53 = arith.constant dense<0.000000e+00> : vector<8x384xf32>
    %184 = tpu.matmul %178, %183, %cst_53 {dimension_numbers = #tpu.dot_dimension_numbers<[1], [0], [0], [1], [0, 0, 1, 1], [], []>} : vector<8x128xf32>, vector<128x384xf32>, vector<8x384xf32> -> vector<8x384xf32>
    %185 = vector.broadcast %7 : vector<1x384xf32> to vector<8x384xf32>
    %186 = arith.addf %184, %185 : vector<8x384xf32>
    %187 = vector.extract_strided_slice %182 {offsets = [0, 0], sizes = [8, 128], strides = [1, 1]} : vector<8x384xf32> to vector<8x128xf32>
    %188 = vector.extract_strided_slice %186 {offsets = [0, 0], sizes = [8, 128], strides = [1, 1]} : vector<8x384xf32> to vector<8x128xf32>
    %189 = arith.addf %187, %188 : vector<8x128xf32>
    %190 = arith.negf %189 : vector<8x128xf32>
    %191 = math.exp %190 : vector<8x128xf32>
    %cst_54 = arith.constant 1.000000e+00 : f32
    %192 = vector.broadcast %cst_54 : f32 to vector<8x128xf32>
    %193 = arith.addf %192, %191 : vector<8x128xf32>
    %194 = arith.divf %192, %193 : vector<8x128xf32>
    %195 = vector.extract_strided_slice %182 {offsets = [0, 128], sizes = [8, 128], strides = [1, 1]} : vector<8x384xf32> to vector<8x128xf32>
    %196 = vector.extract_strided_slice %186 {offsets = [0, 128], sizes = [8, 128], strides = [1, 1]} : vector<8x384xf32> to vector<8x128xf32>
    %197 = arith.addf %195, %196 : vector<8x128xf32>
    %198 = arith.negf %197 : vector<8x128xf32>
    %199 = math.exp %198 : vector<8x128xf32>
    %cst_55 = arith.constant 1.000000e+00 : f32
    %200 = vector.broadcast %cst_55 : f32 to vector<8x128xf32>
    %201 = arith.addf %200, %199 : vector<8x128xf32>
    %202 = arith.divf %200, %201 : vector<8x128xf32>
    %203 = vector.extract_strided_slice %182 {offsets = [0, 256], sizes = [8, 128], strides = [1, 1]} : vector<8x384xf32> to vector<8x128xf32>
    %204 = vector.extract_strided_slice %186 {offsets = [0, 256], sizes = [8, 128], strides = [1, 1]} : vector<8x384xf32> to vector<8x128xf32>
    %205 = arith.mulf %194, %204 : vector<8x128xf32>
    %206 = arith.addf %203, %205 : vector<8x128xf32>
    %207 = math.tanh %206 : vector<8x128xf32>
    %cst_56 = arith.constant 1.000000e+00 : f32
    %208 = vector.broadcast %cst_56 : f32 to vector<8x128xf32>
    %209 = arith.subf %208, %202 : vector<8x128xf32>
    %210 = arith.mulf %209, %207 : vector<8x128xf32>
    %211 = arith.mulf %202, %178 : vector<8x128xf32>
    %212 = arith.addf %210, %211 : vector<8x128xf32>
    %c6_i32 = arith.constant 6 : i32
    %c8_i32_57 = arith.constant 8 : i32
    %213 = arith.muli %c6_i32, %c8_i32_57 : i32
    %214 = tpu.assume_multiple %213, 8 : i32
    %215 = arith.index_cast %214 : i32 to index
    %c0_58 = arith.constant 0 : index
    %216 = vector.load %arg6[%215, %c0_58] : memref<64x384xf32, #tpu.memory_space<vmem>>, vector<8x384xf32>
    %c0_59 = arith.constant 0 : index
    %c0_60 = arith.constant 0 : index
    %217 = vector.load %arg2[%c0_59, %c0_60] : memref<128x384xf32, #tpu.memory_space<vmem>>, vector<128x384xf32>
    %cst_61 = arith.constant dense<0.000000e+00> : vector<8x384xf32>
    %218 = tpu.matmul %212, %217, %cst_61 {dimension_numbers = #tpu.dot_dimension_numbers<[1], [0], [0], [1], [0, 0, 1, 1], [], []>} : vector<8x128xf32>, vector<128x384xf32>, vector<8x384xf32> -> vector<8x384xf32>
    %219 = vector.broadcast %7 : vector<1x384xf32> to vector<8x384xf32>
    %220 = arith.addf %218, %219 : vector<8x384xf32>
    %221 = vector.extract_strided_slice %216 {offsets = [0, 0], sizes = [8, 128], strides = [1, 1]} : vector<8x384xf32> to vector<8x128xf32>
    %222 = vector.extract_strided_slice %220 {offsets = [0, 0], sizes = [8, 128], strides = [1, 1]} : vector<8x384xf32> to vector<8x128xf32>
    %223 = arith.addf %221, %222 : vector<8x128xf32>
    %224 = arith.negf %223 : vector<8x128xf32>
    %225 = math.exp %224 : vector<8x128xf32>
    %cst_62 = arith.constant 1.000000e+00 : f32
    %226 = vector.broadcast %cst_62 : f32 to vector<8x128xf32>
    %227 = arith.addf %226, %225 : vector<8x128xf32>
    %228 = arith.divf %226, %227 : vector<8x128xf32>
    %229 = vector.extract_strided_slice %216 {offsets = [0, 128], sizes = [8, 128], strides = [1, 1]} : vector<8x384xf32> to vector<8x128xf32>
    %230 = vector.extract_strided_slice %220 {offsets = [0, 128], sizes = [8, 128], strides = [1, 1]} : vector<8x384xf32> to vector<8x128xf32>
    %231 = arith.addf %229, %230 : vector<8x128xf32>
    %232 = arith.negf %231 : vector<8x128xf32>
    %233 = math.exp %232 : vector<8x128xf32>
    %cst_63 = arith.constant 1.000000e+00 : f32
    %234 = vector.broadcast %cst_63 : f32 to vector<8x128xf32>
    %235 = arith.addf %234, %233 : vector<8x128xf32>
    %236 = arith.divf %234, %235 : vector<8x128xf32>
    %237 = vector.extract_strided_slice %216 {offsets = [0, 256], sizes = [8, 128], strides = [1, 1]} : vector<8x384xf32> to vector<8x128xf32>
    %238 = vector.extract_strided_slice %220 {offsets = [0, 256], sizes = [8, 128], strides = [1, 1]} : vector<8x384xf32> to vector<8x128xf32>
    %239 = arith.mulf %228, %238 : vector<8x128xf32>
    %240 = arith.addf %237, %239 : vector<8x128xf32>
    %241 = math.tanh %240 : vector<8x128xf32>
    %cst_64 = arith.constant 1.000000e+00 : f32
    %242 = vector.broadcast %cst_64 : f32 to vector<8x128xf32>
    %243 = arith.subf %242, %236 : vector<8x128xf32>
    %244 = arith.mulf %243, %241 : vector<8x128xf32>
    %245 = arith.mulf %236, %212 : vector<8x128xf32>
    %246 = arith.addf %244, %245 : vector<8x128xf32>
    %c7_i32 = arith.constant 7 : i32
    %c8_i32_65 = arith.constant 8 : i32
    %247 = arith.muli %c7_i32, %c8_i32_65 : i32
    %248 = tpu.assume_multiple %247, 8 : i32
    %249 = arith.index_cast %248 : i32 to index
    %c0_66 = arith.constant 0 : index
    %250 = vector.load %arg6[%249, %c0_66] : memref<64x384xf32, #tpu.memory_space<vmem>>, vector<8x384xf32>
    %c0_67 = arith.constant 0 : index
    %c0_68 = arith.constant 0 : index
    %251 = vector.load %arg2[%c0_67, %c0_68] : memref<128x384xf32, #tpu.memory_space<vmem>>, vector<128x384xf32>
    %cst_69 = arith.constant dense<0.000000e+00> : vector<8x384xf32>
    %252 = tpu.matmul %246, %251, %cst_69 {dimension_numbers = #tpu.dot_dimension_numbers<[1], [0], [0], [1], [0, 0, 1, 1], [], []>} : vector<8x128xf32>, vector<128x384xf32>, vector<8x384xf32> -> vector<8x384xf32>
    %253 = vector.broadcast %7 : vector<1x384xf32> to vector<8x384xf32>
    %254 = arith.addf %252, %253 : vector<8x384xf32>
    %255 = vector.extract_strided_slice %250 {offsets = [0, 0], sizes = [8, 128], strides = [1, 1]} : vector<8x384xf32> to vector<8x128xf32>
    %256 = vector.extract_strided_slice %254 {offsets = [0, 0], sizes = [8, 128], strides = [1, 1]} : vector<8x384xf32> to vector<8x128xf32>
    %257 = arith.addf %255, %256 : vector<8x128xf32>
    %258 = arith.negf %257 : vector<8x128xf32>
    %259 = math.exp %258 : vector<8x128xf32>
    %cst_70 = arith.constant 1.000000e+00 : f32
    %260 = vector.broadcast %cst_70 : f32 to vector<8x128xf32>
    %261 = arith.addf %260, %259 : vector<8x128xf32>
    %262 = arith.divf %260, %261 : vector<8x128xf32>
    %263 = vector.extract_strided_slice %250 {offsets = [0, 128], sizes = [8, 128], strides = [1, 1]} : vector<8x384xf32> to vector<8x128xf32>
    %264 = vector.extract_strided_slice %254 {offsets = [0, 128], sizes = [8, 128], strides = [1, 1]} : vector<8x384xf32> to vector<8x128xf32>
    %265 = arith.addf %263, %264 : vector<8x128xf32>
    %266 = arith.negf %265 : vector<8x128xf32>
    %267 = math.exp %266 : vector<8x128xf32>
    %cst_71 = arith.constant 1.000000e+00 : f32
    %268 = vector.broadcast %cst_71 : f32 to vector<8x128xf32>
    %269 = arith.addf %268, %267 : vector<8x128xf32>
    %270 = arith.divf %268, %269 : vector<8x128xf32>
    %271 = vector.extract_strided_slice %250 {offsets = [0, 256], sizes = [8, 128], strides = [1, 1]} : vector<8x384xf32> to vector<8x128xf32>
    %272 = vector.extract_strided_slice %254 {offsets = [0, 256], sizes = [8, 128], strides = [1, 1]} : vector<8x384xf32> to vector<8x128xf32>
    %273 = arith.mulf %262, %272 : vector<8x128xf32>
    %274 = arith.addf %271, %273 : vector<8x128xf32>
    %275 = math.tanh %274 : vector<8x128xf32>
    %cst_72 = arith.constant 1.000000e+00 : f32
    %276 = vector.broadcast %cst_72 : f32 to vector<8x128xf32>
    %277 = arith.subf %276, %270 : vector<8x128xf32>
    %278 = arith.mulf %277, %275 : vector<8x128xf32>
    %279 = arith.mulf %270, %246 : vector<8x128xf32>
    %280 = arith.addf %278, %279 : vector<8x128xf32>
    %c8_i32_73 = arith.constant 8 : i32
    %c0_74 = arith.constant 0 : index
    %c0_75 = arith.constant 0 : index
    %281 = vector.load %arg5[%c0_74, %c0_75] : memref<8x128xf32, #tpu.memory_space<vmem>>, vector<8x128xf32>
    tpu.vector_store %arg5[%c0_74, %c0_75], %280 {strides = array<i32>} : memref<8x128xf32, #tpu.memory_space<vmem>>, vector<8x128xf32>,
    return
  }
}

</mosaic_0001>

<llo_original>
// kernel: rnn_context_encoder.1
$region0: #{rnn_context_encoder.1}
  #allocation0 [shape = 'u32[]', space=smem, size = 0x4, offset = 0x4, fixed_abs, tag = 'smem constant byte address 0x4 - core index']
  #allocation1 [shape = 'u32[72,128]{1,0:T(1,128)}', space=vmem, size = 0x9000, scoped, tag = 'internal scratch']
  #allocation2 [shape = 'f32[64,384]{1,0:T(8,128)}', space=vmem, size = 0x18000, scoped, tag = 'scratch operand']
  %s0 = inlined_call_operand.vmem [shape: f32[64,128], index: 0, kind: input, shape index: {}]
  %s1 = inlined_call_operand.hbm [shape: f32[128,384], index: 1, kind: input, shape index: {}]
  %s2 = inlined_call_operand.hbm [shape: f32[128,384], index: 2, kind: input, shape index: {}]
  %s3 = inlined_call_operand.vmem [shape: f32[1,384], index: 3, kind: input, shape index: {}]
  %s4 = inlined_call_operand.vmem [shape: f32[1,384], index: 4, kind: input, shape index: {}]
  %s5 = inlined_call_operand.vmem [shape: f32[8,128], index: 5, kind: output, shape index: {}]
  %s6 = sld [smem:[#allocation0]]
  $region38: #{rnn_context_encoder.1} parent=0
    _
  %s8 = ssub.s32 1, %s6
  %s9 = scalar_select 0, %s8, %s6
  $region1: #{rnn_context_encoder.1} parent=0
    #allocation3 [shape = 'u8[196608]{0}', space=vmem, size = 0x30000, scoped, tag = 'input window, operand 1, single buffered']
    #allocation4 [shape = 's32[1]{0}', space=sflag, size = 0x4, scoped, tag = 'scoped memory for rnn_context_encoder.1']
    #allocation5 [shape = 'u8[196608]{0}', space=vmem, size = 0x30000, scoped, tag = 'input window, operand 2, single buffered']
    #allocation6 [shape = 's32[1]{0}', space=sflag, size = 0x4, scoped, tag = 'scoped memory for rnn_context_encoder.1']
    %10 = vsyncpa [#allocation4], 0
    %11 = vsyncpa [#allocation6], 0
    // Predicated region
    $region2: #{rnn_context_encoder.1} parent=1 // pred_check
      _
    $region3: #{rnn_context_encoder.1} parent=1 // pred_check_branch
      %13 = sbr.rel (0) target = $region5
    $region4: #{rnn_context_encoder.1} parent=1 // pred_region
      _
    $region5: #{rnn_context_encoder.1} parent=1 // pred_fallthru
      _
    // Predicated region
    $region6: #{rnn_context_encoder.1} parent=1 // pred_check
      _
    $region7: #{rnn_context_encoder.1} parent=1 // pred_check_branch
      %15 = sbr.rel (0) target = $region9
    $region8: #{rnn_context_encoder.1} parent=1 // pred_region
      %17 = vsyncadd [#allocation4], 0
      %s18 = sshll.u32 %s1, 4
      %s19 = int_to_ptr.hbm [resolvable:$true] %s18
      %s20 = sshll.u32 [#allocation3], 4
      %s21 = int_to_ptr.vmem [resolvable:$true] %s20
      %26 = dma.hbm_to_vmem [thread:$0]  %s19, 6144, %s21, [#allocation4], 384, 384, 24
    $region9: #{rnn_context_encoder.1} parent=1 // pred_fallthru
      _
    // Predicated region
    $region10: #{rnn_context_encoder.1} parent=1 // pred_check
      _
    $region11: #{rnn_context_encoder.1} parent=1 // pred_check_branch
      %28 = sbr.rel (0) target = $region13
    $region12: #{rnn_context_encoder.1} parent=1 // pred_region
      %30 = vsyncadd [#allocation6], 0
      %s31 = sshll.u32 %s2, 4
      %s32 = int_to_ptr.hbm [resolvable:$true] %s31
      %s33 = sshll.u32 [#allocation5], 4
      %s34 = int_to_ptr.vmem [resolvable:$true] %s33
      %39 = dma.hbm_to_vmem [thread:$0]  %s32, 6144, %s34, [#allocation6], 384, 384, 24
    $region13: #{rnn_context_encoder.1} parent=1 // pred_fallthru
      _
    // Predicated region
    $region14: #{rnn_context_encoder.1} parent=1 // pred_check
      _
    $region15: #{rnn_context_encoder.1} parent=1 // pred_check_branch
      %41 = sbr.rel (0) target = $region17
    $region16: #{rnn_context_encoder.1} parent=1 // pred_region
      _
    $region17: #{rnn_context_encoder.1} parent=1 // pred_fallthru
      _
    // Predicated region
    $region18: #{rnn_context_encoder.1} parent=1 // pred_check
      _
    $region19: #{rnn_context_encoder.1} parent=1 // pred_check_branch
      %43 = sbr.rel (0) target = $region21
    $region20: #{rnn_context_encoder.1} parent=1 // pred_region
      _
    $region21: #{rnn_context_encoder.1} parent=1 // pred_fallthru
      _
    // Predicated region
    $region22: #{rnn_context_encoder.1} parent=1 // pred_check
      _
    $region23: #{rnn_context_encoder.1} parent=1 // pred_check_branch
      %45 = sbr.rel (0) target = $region25
    $region24: #{rnn_context_encoder.1} parent=1 // pred_region
      %47 = dma.done [#allocation4], 6144
    $region25: #{rnn_context_encoder.1} parent=1 // pred_fallthru
      _
    // Predicated region
    $region26: #{rnn_context_encoder.1} parent=1 // pred_check
      _
    $region27: #{rnn_context_encoder.1} parent=1 // pred_check_branch
      %49 = sbr.rel (0) target = $region29
    $region28: #{rnn_context_encoder.1} parent=1 // pred_region
      %51 = dma.done [#allocation6], 6144
    $region29: #{rnn_context_encoder.1} parent=1 // pred_fallthru
      _
    %v52 = vld [vmem:[%s0] sm:$0xff]
    %v53 = vld [vmem:[%s0 + $0x8] sm:$0xff]
    %v54 = vld [vmem:[%s0 + $0x10] sm:$0xff]
    %v55 = vld [vmem:[%s0 + $0x18] sm:$0xff]
    %v56 = vld [vmem:[%s0 + $0x20] sm:$0xff]
    %v57 = vld [vmem:[%s0 + $0x28] sm:$0xff]
    %v58 = vld [vmem:[%s0 + $0x30] sm:$0xff]
    %v59 = vld [vmem:[%s0 + $0x38] sm:$0xff]
    %v60 = vld [vmem:[#allocation3] sm:$0xff]
    %v61 = vld [vmem:[#allocation3 + $0x8] sm:$0xff]
    %v62 = vld [vmem:[#allocation3 + $0x10] sm:$0xff]
    %v63 = vld [vmem:[#allocation3 + $0x18] sm:$0xff]
    %v64 = vld [vmem:[#allocation3 + $0x20] sm:$0xff]
    %v65 = vld [vmem:[#allocation3 + $0x28] sm:$0xff]
    %v66 = vld [vmem:[#allocation3 + $0x30] sm:$0xff]
    %v67 = vld [vmem:[#allocation3 + $0x38] sm:$0xff]
    %v68 = vld [vmem:[#allocation3 + $0x40] sm:$0xff]
    %v69 = vld [vmem:[#allocation3 + $0x48] sm:$0xff]
    %v70 = vld [vmem:[#allocation3 + $0x50] sm:$0xff]
    %v71 = vld [vmem:[#allocation3 + $0x58] sm:$0xff]
    %v72 = vld [vmem:[#allocation3 + $0x60] sm:$0xff]
    %v73 = vld [vmem:[#allocation3 + $0x68] sm:$0xff]
    %v74 = vld [vmem:[#allocation3 + $0x70] sm:$0xff]
    %v75 = vld [vmem:[#allocation3 + $0x78] sm:$0xff]
    %v76 = vld [vmem:[#allocation3 + $0x80] sm:$0xff]
    %v77 = vld [vmem:[#allocation3 + $0x88] sm:$0xff]
    %v78 = vld [vmem:[#allocation3 + $0x90] sm:$0xff]
    %v79 = vld [vmem:[#allocation3 + $0x98] sm:$0xff]
    %v80 = vld [vmem:[#allocation3 + $0xa0] sm:$0xff]
    %v81 = vld [vmem:[#allocation3 + $0xa8] sm:$0xff]
    %v82 = vld [vmem:[#allocation3 + $0xb0] sm:$0xff]
    %v83 = vld [vmem:[#allocation3 + $0xb8] sm:$0xff]
    %v84 = vld [vmem:[#allocation3 + $0xc0] sm:$0xff]
    %v85 = vld [vmem:[#allocation3 + $0xc8] sm:$0xff]
    %v86 = vld [vmem:[#allocation3 + $0xd0] sm:$0xff]
    %v87 = vld [vmem:[#allocation3 + $0xd8] sm:$0xff]
    %v88 = vld [vmem:[#allocation3 + $0xe0] sm:$0xff]
    %v89 = vld [vmem:[#allocation3 + $0xe8] sm:$0xff]
    %v90 = vld [vmem:[#allocation3 + $0xf0] sm:$0xff]
    %v91 = vld [vmem:[#allocation3 + $0xf8] sm:$0xff]
    %v92 = vld [vmem:[#allocation3 + $0x100] sm:$0xff]
    %v93 = vld [vmem:[#allocation3 + $0x108] sm:$0xff]
    %v94 = vld [vmem:[#allocation3 + $0x110] sm:$0xff]
    %v95 = vld [vmem:[#allocation3 + $0x118] sm:$0xff]
    %v96 = vld [vmem:[#allocation3 + $0x120] sm:$0xff]
    %v97 = vld [vmem:[#allocation3 + $0x128] sm:$0xff]
    %v98 = vld [vmem:[#allocation3 + $0x130] sm:$0xff]
    %v99 = vld [vmem:[#allocation3 + $0x138] sm:$0xff]
    %v100 = vld [vmem:[#allocation3 + $0x140] sm:$0xff]
    %v101 = vld [vmem:[#allocation3 + $0x148] sm:$0xff]
    %v102 = vld [vmem:[#allocation3 + $0x150] sm:$0xff]
    %v103 = vld [vmem:[#allocation3 + $0x158] sm:$0xff]
    %v104 = vld [vmem:[#allocation3 + $0x160] sm:$0xff]
    %v105 = vld [vmem:[#allocation3 + $0x168] sm:$0xff]
    %v106 = vld [vmem:[#allocation3 + $0x170] sm:$0xff]
    %v107 = vld [vmem:[#allocation3 + $0x178] sm:$0xff]
    %v108 = vld [vmem:[%s3] sm:$0x7]
    %v110 = vperm.slane %v108, 0
    %v111 = vperm.slane %v108, 1
    %v112 = vperm.slane %v108, 2
    %116 = vmatpush.msra.mxu0 %v105
    %117 = vmatpush.msra.mxu0 %v102
    %118 = vmatpush.msra.mxu0 %v99
    %119 = vmatpush.msra.mxu0 %v96
    %120 = vmatpush.msra.mxu0 %v93
    %121 = vmatpush.msra.mxu0 %v90
    %122 = vmatpush.msra.mxu0 %v87
    %123 = vmatpush.msra.mxu0 %v84
    %124 = vmatpush.msra.mxu0 %v81
    %125 = vmatpush.msra.mxu0 %v78
    %126 = vmatpush.msra.mxu0 %v75
    %127 = vmatpush.msra.mxu0 %v72
    %128 = vmatpush.msra.mxu0 %v69
    %129 = vmatpush.msra.mxu0 %v66
    %130 = vmatpush.msra.mxu0 %v63
    %131 = vmatpush.msra.mxu0 %v60
    %132 = vmatmul.f32.gmra.mxu0 %v52
    %v133 = vpop.f32.mrf.mxu0
    %v134 = vadd.f32 %v110, %v133
    %135 = vmatmul.f32.gmra.mxu0 %v53
    %v136 = vpop.f32.mrf.mxu0
    %v137 = vadd.f32 %v110, %v136
    %138 = vmatmul.f32.gmra.mxu0 %v54
    %v139 = vpop.f32.mrf.mxu0
    %v140 = vadd.f32 %v110, %v139
    %141 = vmatmul.f32.gmra.mxu0 %v55
    %v142 = vpop.f32.mrf.mxu0
    %v143 = vadd.f32 %v110, %v142
    %144 = vmatmul.f32.gmra.mxu0 %v56
    %v145 = vpop.f32.mrf.mxu0
    %v146 = vadd.f32 %v110, %v145
    %147 = vmatmul.f32.gmra.mxu0 %v57
    %v148 = vpop.f32.mrf.mxu0
    %v149 = vadd.f32 %v110, %v148
    %150 = vmatmul.f32.gmra.mxu0 %v58
    %v151 = vpop.f32.mrf.mxu0
    %v152 = vadd.f32 %v110, %v151
    %153 = vmatmul.f32.gmra.mxu0 %v59
    %v154 = vpop.f32.mrf.mxu0
    %v155 = vadd.f32 %v110, %v154
    %156 = vdwg.mxu0
    %157 = vmatpush.msra.mxu0 %v106
    %158 = vmatpush.msra.mxu0 %v103
    %159 = vmatpush.msra.mxu0 %v100
    %160 = vmatpush.msra.mxu0 %v97
    %161 = vmatpush.msra.mxu0 %v94
    %162 = vmatpush.msra.mxu0 %v91
    %163 = vmatpush.msra.mxu0 %v88
    %164 = vmatpush.msra.mxu0 %v85
    %165 = vmatpush.msra.mxu0 %v82
    %166 = vmatpush.msra.mxu0 %v79
    %167 = vmatpush.msra.mxu0 %v76
    %168 = vmatpush.msra.mxu0 %v73
    %169 = vmatpush.msra.mxu0 %v70
    %170 = vmatpush.msra.mxu0 %v67
    %171 = vmatpush.msra.mxu0 %v64
    %172 = vmatpush.msra.mxu0 %v61
    %173 = vmatmul.f32.gmra.mxu0 %v52
    %v174 = vpop.f32.mrf.mxu0
    %v175 = vadd.f32 %v111, %v174
    %176 = vmatmul.f32.gmra.mxu0 %v53
    %v177 = vpop.f32.mrf.mxu0
    %v178 = vadd.f32 %v111, %v177
    %179 = vmatmul.f32.gmra.mxu0 %v54
    %v180 = vpop.f32.mrf.mxu0
    %v181 = vadd.f32 %v111, %v180
    %182 = vmatmul.f32.gmra.mxu0 %v55
    %v183 = vpop.f32.mrf.mxu0
    %v184 = vadd.f32 %v111, %v183
    %185 = vmatmul.f32.gmra.mxu0 %v56
    %v186 = vpop.f32.mrf.mxu0
    %v187 = vadd.f32 %v111, %v186
    %188 = vmatmul.f32.gmra.mxu0 %v57
    %v189 = vpop.f32.mrf.mxu0
    %v190 = vadd.f32 %v111, %v189
    %191 = vmatmul.f32.gmra.mxu0 %v58
    %v192 = vpop.f32.mrf.mxu0
    %v193 = vadd.f32 %v111, %v192
    %194 = vmatmul.f32.gmra.mxu0 %v59
    %v195 = vpop.f32.mrf.mxu0
    %v196 = vadd.f32 %v111, %v195
    %197 = vdwg.mxu0
    %198 = vmatpush.msra.mxu0 %v107
    %199 = vmatpush.msra.mxu0 %v104
    %200 = vmatpush.msra.mxu0 %v101
    %201 = vmatpush.msra.mxu0 %v98
    %202 = vmatpush.msra.mxu0 %v95
    %203 = vmatpush.msra.mxu0 %v92
    %204 = vmatpush.msra.mxu0 %v89
    %205 = vmatpush.msra.mxu0 %v86
    %206 = vmatpush.msra.mxu0 %v83
    %207 = vmatpush.msra.mxu0 %v80
    %208 = vmatpush.msra.mxu0 %v77
    %209 = vmatpush.msra.mxu0 %v74
    %210 = vmatpush.msra.mxu0 %v71
    %211 = vmatpush.msra.mxu0 %v68
    %212 = vmatpush.msra.mxu0 %v65
    %213 = vmatpush.msra.mxu0 %v62
    %214 = vmatmul.f32.gmra.mxu0 %v52
    %v215 = vpop.f32.mrf.mxu0
    %v216 = vadd.f32 %v112, %v215
    %217 = vmatmul.f32.gmra.mxu0 %v53
    %v218 = vpop.f32.mrf.mxu0
    %v219 = vadd.f32 %v112, %v218
    %220 = vmatmul.f32.gmra.mxu0 %v54
    %v221 = vpop.f32.mrf.mxu0
    %v222 = vadd.f32 %v112, %v221
    %223 = vmatmul.f32.gmra.mxu0 %v55
    %v224 = vpop.f32.mrf.mxu0
    %v225 = vadd.f32 %v112, %v224
    %226 = vmatmul.f32.gmra.mxu0 %v56
    %v227 = vpop.f32.mrf.mxu0
    %v228 = vadd.f32 %v112, %v227
    %229 = vmatmul.f32.gmra.mxu0 %v57
    %v230 = vpop.f32.mrf.mxu0
    %v231 = vadd.f32 %v112, %v230
    %232 = vmatmul.f32.gmra.mxu0 %v58
    %v233 = vpop.f32.mrf.mxu0
    %v234 = vadd.f32 %v112, %v233
    %235 = vmatmul.f32.gmra.mxu0 %v59
    %v236 = vpop.f32.mrf.mxu0
    %v237 = vadd.f32 %v112, %v236
    %238 = vdwg.mxu0
    %239 = vst [vmem:[#allocation2] sm:$0xff] %v134
    %240 = vst [vmem:[#allocation2 + $0x8] sm:$0xff] %v175
    %241 = vst [vmem:[#allocation2 + $0x10] sm:$0xff] %v216
    %242 = vst [vmem:[#allocation2 + $0x18] sm:$0xff] %v137
    %243 = vst [vmem:[#allocation2 + $0x20] sm:$0xff] %v178
    %244 = vst [vmem:[#allocation2 + $0x28] sm:$0xff] %v219
    %245 = vst [vmem:[#allocation2 + $0x30] sm:$0xff] %v140
    %246 = vst [vmem:[#allocation2 + $0x38] sm:$0xff] %v181
    %247 = vst [vmem:[#allocation2 + $0x40] sm:$0xff] %v222
    %248 = vst [vmem:[#allocation2 + $0x48] sm:$0xff] %v143
    %249 = vst [vmem:[#allocation2 + $0x50] sm:$0xff] %v184
    %250 = vst [vmem:[#allocation2 + $0x58] sm:$0xff] %v225
    %251 = vst [vmem:[#allocation2 + $0x60] sm:$0xff] %v146
    %252 = vst [vmem:[#allocation2 + $0x68] sm:$0xff] %v187
    %253 = vst [vmem:[#allocation2 + $0x70] sm:$0xff] %v228
    %254 = vst [vmem:[#allocation2 + $0x78] sm:$0xff] %v149
    %255 = vst [vmem:[#allocation2 + $0x80] sm:$0xff] %v190
    %256 = vst [vmem:[#allocation2 + $0x88] sm:$0xff] %v231
    %257 = vst [vmem:[#allocation2 + $0x90] sm:$0xff] %v152
    %258 = vst [vmem:[#allocation2 + $0x98] sm:$0xff] %v193
    %259 = vst [vmem:[#allocation2 + $0xa0] sm:$0xff] %v234
    %260 = vst [vmem:[#allocation2 + $0xa8] sm:$0xff] %v155
    %261 = vst [vmem:[#allocation2 + $0xb0] sm:$0xff] %v196
    %262 = vst [vmem:[#allocation2 + $0xb8] sm:$0xff] %v237
    %v263 = vld [vmem:[%s4] sm:$0x7]
    %s264 = smul.u32 0, 3
    %s265 = smul.addr %s264, 8
    %s266 = scalar_lea.vmem [#allocation2], %s265
    %v267 = vld [vmem:[%s266] sm:$0xff]
    %v268 = vld [vmem:[%s266 + $0x8] sm:$0xff]
    %v269 = vld [vmem:[%s266 + $0x10] sm:$0xff]
    %v270 = vld [vmem:[#allocation5] sm:$0xff]
    %v271 = vld [vmem:[#allocation5 + $0x8] sm:$0xff]
    %v272 = vld [vmem:[#allocation5 + $0x10] sm:$0xff]
    %v273 = vld [vmem:[#allocation5 + $0x18] sm:$0xff]
    %v274 = vld [vmem:[#allocation5 + $0x20] sm:$0xff]
    %v275 = vld [vmem:[#allocation5 + $0x28] sm:$0xff]
    %v276 = vld [vmem:[#allocation5 + $0x30] sm:$0xff]
    %v277 = vld [vmem:[#allocation5 + $0x38] sm:$0xff]
    %v278 = vld [vmem:[#allocation5 + $0x40] sm:$0xff]
    %v279 = vld [vmem:[#allocation5 + $0x48] sm:$0xff]
    %v280 = vld [vmem:[#allocation5 + $0x50] sm:$0xff]
    %v281 = vld [vmem:[#allocation5 + $0x58] sm:$0xff]
    %v282 = vld [vmem:[#allocation5 + $0x60] sm:$0xff]
    %v283 = vld [vmem:[#allocation5 + $0x68] sm:$0xff]
    %v284 = vld [vmem:[#allocation5 + $0x70] sm:$0xff]
    %v285 = vld [vmem:[#allocation5 + $0x78] sm:$0xff]
    %v286 = vld [vmem:[#allocation5 + $0x80] sm:$0xff]
    %v287 = vld [vmem:[#allocation5 + $0x88] sm:$0xff]
    %v288 = vld [vmem:[#allocation5 + $0x90] sm:$0xff]
    %v289 = vld [vmem:[#allocation5 + $0x98] sm:$0xff]
    %v290 = vld [vmem:[#allocation5 + $0xa0] sm:$0xff]
    %v291 = vld [vmem:[#allocation5 + $0xa8] sm:$0xff]
    %v292 = vld [vmem:[#allocation5 + $0xb0] sm:$0xff]
    %v293 = vld [vmem:[#allocation5 + $0xb8] sm:$0xff]
    %v294 = vld [vmem:[#allocation5 + $0xc0] sm:$0xff]
    %v295 = vld [vmem:[#allocation5 + $0xc8] sm:$0xff]
    %v296 = vld [vmem:[#allocation5 + $0xd0] sm:$0xff]
    %v297 = vld [vmem:[#allocation5 + $0xd8] sm:$0xff]
    %v298 = vld [vmem:[#allocation5 + $0xe0] sm:$0xff]
    %v299 = vld [vmem:[#allocation5 + $0xe8] sm:$0xff]
    %v300 = vld [vmem:[#allocation5 + $0xf0] sm:$0xff]
    %v301 = vld [vmem:[#allocation5 + $0xf8] sm:$0xff]
    %v302 = vld [vmem:[#allocation5 + $0x100] sm:$0xff]
    %v303 = vld [vmem:[#allocation5 + $0x108] sm:$0xff]
    %v304 = vld [vmem:[#allocation5 + $0x110] sm:$0xff]
    %v305 = vld [vmem:[#allocation5 + $0x118] sm:$0xff]
    %v306 = vld [vmem:[#allocation5 + $0x120] sm:$0xff]
    %v307 = vld [vmem:[#allocation5 + $0x128] sm:$0xff]
    %v308 = vld [vmem:[#allocation5 + $0x130] sm:$0xff]
    %v309 = vld [vmem:[#allocation5 + $0x138] sm:$0xff]
    %v310 = vld [vmem:[#allocation5 + $0x140] sm:$0xff]
    %v311 = vld [vmem:[#allocation5 + $0x148] sm:$0xff]
    %v312 = vld [vmem:[#allocation5 + $0x150] sm:$0xff]
    %v313 = vld [vmem:[#allocation5 + $0x158] sm:$0xff]
    %v314 = vld [vmem:[#allocation5 + $0x160] sm:$0xff]
    %v315 = vld [vmem:[#allocation5 + $0x168] sm:$0xff]
    %v316 = vld [vmem:[#allocation5 + $0x170] sm:$0xff]
    %v317 = vld [vmem:[#allocation5 + $0x178] sm:$0xff]
    %v319 = vperm.slane %v263, 0
    %v320 = vperm.slane %v263, 1
    %v321 = vperm.slane %v263, 2
    %325 = vmatpush.msra.mxu0 %v315
    %326 = vmatpush.msra.mxu0 %v312
    %327 = vmatpush.msra.mxu0 %v309
    %328 = vmatpush.msra.mxu0 %v306
    %329 = vmatpush.msra.mxu0 %v303
    %330 = vmatpush.msra.mxu0 %v300
    %331 = vmatpush.msra.mxu0 %v297
    %332 = vmatpush.msra.mxu0 %v294
    %333 = vmatpush.msra.mxu0 %v291
    %334 = vmatpush.msra.mxu0 %v288
    %335 = vmatpush.msra.mxu0 %v285
    %336 = vmatpush.msra.mxu0 %v282
    %337 = vmatpush.msra.mxu0 %v279
    %338 = vmatpush.msra.mxu0 %v276
    %339 = vmatpush.msra.mxu0 %v273
    %340 = vmatpush.msra.mxu0 %v270
    %341 = vmatmul.f32.gmra.mxu0 0.0
    %v342 = vpop.f32.mrf.mxu0
    %v343 = vadd.f32 %v319, %v342
    %344 = vdwg.mxu0
    %345 = vmatpush.msra.mxu0 %v316
    %346 = vmatpush.msra.mxu0 %v313
    %347 = vmatpush.msra.mxu0 %v310
    %348 = vmatpush.msra.mxu0 %v307
    %349 = vmatpush.msra.mxu0 %v304
    %350 = vmatpush.msra.mxu0 %v301
    %351 = vmatpush.msra.mxu0 %v298
    %352 = vmatpush.msra.mxu0 %v295
    %353 = vmatpush.msra.mxu0 %v292
    %354 = vmatpush.msra.mxu0 %v289
    %355 = vmatpush.msra.mxu0 %v286
    %356 = vmatpush.msra.mxu0 %v283
    %357 = vmatpush.msra.mxu0 %v280
    %358 = vmatpush.msra.mxu0 %v277
    %359 = vmatpush.msra.mxu0 %v274
    %360 = vmatpush.msra.mxu0 %v271
    %361 = vmatmul.f32.gmra.mxu0 0.0
    %v362 = vpop.f32.mrf.mxu0
    %v363 = vadd.f32 %v320, %v362
    %364 = vdwg.mxu0
    %365 = vmatpush.msra.mxu0 %v317
    %366 = vmatpush.msra.mxu0 %v314
    %367 = vmatpush.msra.mxu0 %v311
    %368 = vmatpush.msra.mxu0 %v308
    %369 = vmatpush.msra.mxu0 %v305
    %370 = vmatpush.msra.mxu0 %v302
    %371 = vmatpush.msra.mxu0 %v299
    %372 = vmatpush.msra.mxu0 %v296
    %373 = vmatpush.msra.mxu0 %v293
    %374 = vmatpush.msra.mxu0 %v290
    %375 = vmatpush.msra.mxu0 %v287
    %376 = vmatpush.msra.mxu0 %v284
    %377 = vmatpush.msra.mxu0 %v281
    %378 = vmatpush.msra.mxu0 %v278
    %379 = vmatpush.msra.mxu0 %v275
    %380 = vmatpush.msra.mxu0 %v272
    %381 = vmatmul.f32.gmra.mxu0 0.0
    %v382 = vpop.f32.mrf.mxu0
    %v383 = vadd.f32 %v321, %v382
    %384 = vdwg.mxu0
    %v385 = vadd.f32 %v267, %v343
    %v386 = vxor.u32 %v385, 2147483648
    %v387 = vmul.f32 %v386, 1.442695
    %v388 = vpow.pop %v387
    %v389 = vadd.f32 %v388, 1.0
    %v390 = vrcp.pop %v389
    %v391 = vmul.f32 %v389, %v390
    %v392 = vsub.f32 1.0, %v391
    %v393 = vmul.f32 %v390, %v392
    %v394 = vadd.f32 %v390, %v393
    %vm395 = vweird.f32 %v389
    %vm396 = vweird.f32 %v390
    %vm397 = vmor %vm395, %vm396
    %v398 = vsel %vm397, %v390, %v394
    %v399 = vand.u32 2147483647, %v389
    %vm400 = vcmp.eq.f32.partialorder %v399, 8.507059e+37
    %v401 = vand.u32 %v389, 2147483648
    %v402 = vor.u32 1.1754944e-38, %v401
    %v403 = vsel %vm400, %v402, %v398
    %v404 = vmul.f32 1.0, %v403
    %v405 = vadd.f32 %v268, %v363
    %v406 = vxor.u32 %v405, 2147483648
    %v407 = vmul.f32 %v406, 1.442695
    %v408 = vpow.pop %v407
    %v409 = vadd.f32 %v408, 1.0
    %v410 = vrcp.pop %v409
    %v411 = vmul.f32 %v409, %v410
    %v412 = vsub.f32 1.0, %v411
    %v413 = vmul.f32 %v410, %v412
    %v414 = vadd.f32 %v410, %v413
    %vm415 = vweird.f32 %v409
    %vm416 = vweird.f32 %v410
    %vm417 = vmor %vm415, %vm416
    %v418 = vsel %vm417, %v410, %v414
    %v419 = vand.u32 2147483647, %v409
    %vm420 = vcmp.eq.f32.partialorder %v419, 8.507059e+37
    %v421 = vand.u32 %v409, 2147483648
    %v422 = vor.u32 1.1754944e-38, %v421
    %v423 = vsel %vm420, %v422, %v418
    %v424 = vmul.f32 1.0, %v423
    %v425 = vmul.f32 %v404, %v383
    %v426 = vadd.f32 %v269, %v425
    %v427 = vtanh.pop %v426
    %v428 = vsub.f32 1.0, %v424
    %v429 = vmul.f32 %v428, %v427
    %v430 = vmul.f32 %v424, 0.0
    %v431 = vadd.f32 %v429, %v430
    %s432 = smul.u32 1, 3
    %s433 = smul.addr %s432, 8
    %s434 = scalar_lea.vmem [#allocation2], %s433
    %v435 = vld [vmem:[%s434] sm:$0xff]
    %v436 = vld [vmem:[%s434 + $0x8] sm:$0xff]
    %v437 = vld [vmem:[%s434 + $0x10] sm:$0xff]
    %438 = vmatpush.msra.mxu0 %v315
    %439 = vmatpush.msra.mxu0 %v312
    %440 = vmatpush.msra.mxu0 %v309
    %441 = vmatpush.msra.mxu0 %v306
    %442 = vmatpush.msra.mxu0 %v303
    %443 = vmatpush.msra.mxu0 %v300
    %444 = vmatpush.msra.mxu0 %v297
    %445 = vmatpush.msra.mxu0 %v294
    %446 = vmatpush.msra.mxu0 %v291
    %447 = vmatpush.msra.mxu0 %v288
    %448 = vmatpush.msra.mxu0 %v285
    %449 = vmatpush.msra.mxu0 %v282
    %450 = vmatpush.msra.mxu0 %v279
    %451 = vmatpush.msra.mxu0 %v276
    %452 = vmatpush.msra.mxu0 %v273
    %453 = vmatpush.msra.mxu0 %v270
    %454 = vmatmul.f32.gmra.mxu0 %v431
    %v455 = vpop.f32.mrf.mxu0
    %v456 = vadd.f32 %v319, %v455
    %457 = vdwg.mxu0
    %458 = vmatpush.msra.mxu0 %v316
    %459 = vmatpush.msra.mxu0 %v313
    %460 = vmatpush.msra.mxu0 %v310
    %461 = vmatpush.msra.mxu0 %v307
    %462 = vmatpush.msra.mxu0 %v304
    %463 = vmatpush.msra.mxu0 %v301
    %464 = vmatpush.msra.mxu0 %v298
    %465 = vmatpush.msra.mxu0 %v295
    %466 = vmatpush.msra.mxu0 %v292
    %467 = vmatpush.msra.mxu0 %v289
    %468 = vmatpush.msra.mxu0 %v286
    %469 = vmatpush.msra.mxu0 %v283
    %470 = vmatpush.msra.mxu0 %v280
    %471 = vmatpush.msra.mxu0 %v277
    %472 = vmatpush.msra.mxu0 %v274
    %473 = vmatpush.msra.mxu0 %v271
    %474 = vmatmul.f32.gmra.mxu0 %v431
    %v475 = vpop.f32.mrf.mxu0
    %v476 = vadd.f32 %v320, %v475
    %477 = vdwg.mxu0
    %478 = vmatpush.msra.mxu0 %v317
    %479 = vmatpush.msra.mxu0 %v314
    %480 = vmatpush.msra.mxu0 %v311
    %481 = vmatpush.msra.mxu0 %v308
    %482 = vmatpush.msra.mxu0 %v305
    %483 = vmatpush.msra.mxu0 %v302
    %484 = vmatpush.msra.mxu0 %v299
    %485 = vmatpush.msra.mxu0 %v296
    %486 = vmatpush.msra.mxu0 %v293
    %487 = vmatpush.msra.mxu0 %v290
    %488 = vmatpush.msra.mxu0 %v287
    %489 = vmatpush.msra.mxu0 %v284
    %490 = vmatpush.msra.mxu0 %v281
    %491 = vmatpush.msra.mxu0 %v278
    %492 = vmatpush.msra.mxu0 %v275
    %493 = vmatpush.msra.mxu0 %v272
    %494 = vmatmul.f32.gmra.mxu0 %v431
    %v495 = vpop.f32.mrf.mxu0
    %v496 = vadd.f32 %v321, %v495
    %497 = vdwg.mxu0
    %v498 = vadd.f32 %v435, %v456
    %v499 = vxor.u32 %v498, 2147483648
    %v500 = vmul.f32 %v499, 1.442695
    %v501 = vpow.pop %v500
    %v502 = vadd.f32 %v501, 1.0
    %v503 = vrcp.pop %v502
    %v504 = vmul.f32 %v502, %v503
    %v505 = vsub.f32 1.0, %v504
    %v506 = vmul.f32 %v503, %v505
    %v507 = vadd.f32 %v503, %v506
    %vm508 = vweird.f32 %v502
    %vm509 = vweird.f32 %v503
    %vm510 = vmor %vm508, %vm509
    %v511 = vsel %vm510, %v503, %v507
    %v512 = vand.u32 2147483647, %v502
    %vm513 = vcmp.eq.f32.partialorder %v512, 8.507059e+37
    %v514 = vand.u32 %v502, 2147483648
    %v515 = vor.u32 1.1754944e-38, %v514
    %v516 = vsel %vm513, %v515, %v511
    %v517 = vmul.f32 1.0, %v516
    %v518 = vadd.f32 %v436, %v476
    %v519 = vxor.u32 %v518, 2147483648
    %v520 = vmul.f32 %v519, 1.442695
    %v521 = vpow.pop %v520
    %v522 = vadd.f32 %v521, 1.0
    %v523 = vrcp.pop %v522
    %v524 = vmul.f32 %v522, %v523
    %v525 = vsub.f32 1.0, %v524
    %v526 = vmul.f32 %v523, %v525
    %v527 = vadd.f32 %v523, %v526
    %vm528 = vweird.f32 %v522
    %vm529 = vweird.f32 %v523
    %vm530 = vmor %vm528, %vm529
    %v531 = vsel %vm530, %v523, %v527
    %v532 = vand.u32 2147483647, %v522
    %vm533 = vcmp.eq.f32.partialorder %v532, 8.507059e+37
    %v534 = vand.u32 %v522, 2147483648
    %v535 = vor.u32 1.1754944e-38, %v534
    %v536 = vsel %vm533, %v535, %v531
    %v537 = vmul.f32 1.0, %v536
    %v538 = vmul.f32 %v517, %v496
    %v539 = vadd.f32 %v437, %v538
    %v540 = vtanh.pop %v539
    %v541 = vsub.f32 1.0, %v537
    %v542 = vmul.f32 %v541, %v540
    %v543 = vmul.f32 %v537, %v431
    %v544 = vadd.f32 %v542, %v543
    %s545 = smul.u32 2, 3
    %s546 = smul.addr %s545, 8
    %s547 = scalar_lea.vmem [#allocation2], %s546
    %v548 = vld [vmem:[%s547] sm:$0xff]
    %v549 = vld [vmem:[%s547 + $0x8] sm:$0xff]
    %v550 = vld [vmem:[%s547 + $0x10] sm:$0xff]
    %551 = vmatpush.msra.mxu0 %v315
    %552 = vmatpush.msra.mxu0 %v312
    %553 = vmatpush.msra.mxu0 %v309
    %554 = vmatpush.msra.mxu0 %v306
    %555 = vmatpush.msra.mxu0 %v303
    %556 = vmatpush.msra.mxu0 %v300
    %557 = vmatpush.msra.mxu0 %v297
    %558 = vmatpush.msra.mxu0 %v294
    %559 = vmatpush.msra.mxu0 %v291
    %560 = vmatpush.msra.mxu0 %v288
    %561 = vmatpush.msra.mxu0 %v285
    %562 = vmatpush.msra.mxu0 %v282
    %563 = vmatpush.msra.mxu0 %v279
    %564 = vmatpush.msra.mxu0 %v276
    %565 = vmatpush.msra.mxu0 %v273
    %566 = vmatpush.msra.mxu0 %v270
    %567 = vmatmul.f32.gmra.mxu0 %v544
    %v568 = vpop.f32.mrf.mxu0
    %v569 = vadd.f32 %v319, %v568
    %570 = vdwg.mxu0
    %571 = vmatpush.msra.mxu0 %v316
    %572 = vmatpush.msra.mxu0 %v313
    %573 = vmatpush.msra.mxu0 %v310
    %574 = vmatpush.msra.mxu0 %v307
    %575 = vmatpush.msra.mxu0 %v304
    %576 = vmatpush.msra.mxu0 %v301
    %577 = vmatpush.msra.mxu0 %v298
    %578 = vmatpush.msra.mxu0 %v295
    %579 = vmatpush.msra.mxu0 %v292
    %580 = vmatpush.msra.mxu0 %v289
    %581 = vmatpush.msra.mxu0 %v286
    %582 = vmatpush.msra.mxu0 %v283
    %583 = vmatpush.msra.mxu0 %v280
    %584 = vmatpush.msra.mxu0 %v277
    %585 = vmatpush.msra.mxu0 %v274
    %586 = vmatpush.msra.mxu0 %v271
    %587 = vmatmul.f32.gmra.mxu0 %v544
    %v588 = vpop.f32.mrf.mxu0
    %v589 = vadd.f32 %v320, %v588
    %590 = vdwg.mxu0
    %591 = vmatpush.msra.mxu0 %v317
    %592 = vmatpush.msra.mxu0 %v314
    %593 = vmatpush.msra.mxu0 %v311
    %594 = vmatpush.msra.mxu0 %v308
    %595 = vmatpush.msra.mxu0 %v305
    %596 = vmatpush.msra.mxu0 %v302
    %597 = vmatpush.msra.mxu0 %v299
    %598 = vmatpush.msra.mxu0 %v296
    %599 = vmatpush.msra.mxu0 %v293
    %600 = vmatpush.msra.mxu0 %v290
    %601 = vmatpush.msra.mxu0 %v287
    %602 = vmatpush.msra.mxu0 %v284
    %603 = vmatpush.msra.mxu0 %v281
    %604 = vmatpush.msra.mxu0 %v278
    %605 = vmatpush.msra.mxu0 %v275
    %606 = vmatpush.msra.mxu0 %v272
    %607 = vmatmul.f32.gmra.mxu0 %v544
    %v608 = vpop.f32.mrf.mxu0
    %v609 = vadd.f32 %v321, %v608
    %610 = vdwg.mxu0
    %v611 = vadd.f32 %v548, %v569
    %v612 = vxor.u32 %v611, 2147483648
    %v613 = vmul.f32 %v612, 1.442695
    %v614 = vpow.pop %v613
    %v615 = vadd.f32 %v614, 1.0
    %v616 = vrcp.pop %v615
    %v617 = vmul.f32 %v615, %v616
    %v618 = vsub.f32 1.0, %v617
    %v619 = vmul.f32 %v616, %v618
    %v620 = vadd.f32 %v616, %v619
    %vm621 = vweird.f32 %v615
    %vm622 = vweird.f32 %v616
    %vm623 = vmor %vm621, %vm622
    %v624 = vsel %vm623, %v616, %v620
    %v625 = vand.u32 2147483647, %v615
    %vm626 = vcmp.eq.f32.partialorder %v625, 8.507059e+37
    %v627 = vand.u32 %v615, 2147483648
    %v628 = vor.u32 1.1754944e-38, %v627
    %v629 = vsel %vm626, %v628, %v624
    %v630 = vmul.f32 1.0, %v629
    %v631 = vadd.f32 %v549, %v589
    %v632 = vxor.u32 %v631, 2147483648
    %v633 = vmul.f32 %v632, 1.442695
    %v634 = vpow.pop %v633
    %v635 = vadd.f32 %v634, 1.0
    %v636 = vrcp.pop %v635
    %v637 = vmul.f32 %v635, %v636
    %v638 = vsub.f32 1.0, %v637
    %v639 = vmul.f32 %v636, %v638
    %v640 = vadd.f32 %v636, %v639
    %vm641 = vweird.f32 %v635
    %vm642 = vweird.f32 %v636
    %vm643 = vmor %vm641, %vm642
    %v644 = vsel %vm643, %v636, %v640
    %v645 = vand.u32 2147483647, %v635
    %vm646 = vcmp.eq.f32.partialorder %v645, 8.507059e+37
    %v647 = vand.u32 %v635, 2147483648
    %v648 = vor.u32 1.1754944e-38, %v647
    %v649 = vsel %vm646, %v648, %v644
    %v650 = vmul.f32 1.0, %v649
    %v651 = vmul.f32 %v630, %v609
    %v652 = vadd.f32 %v550, %v651
    %v653 = vtanh.pop %v652
    %v654 = vsub.f32 1.0, %v650
    %v655 = vmul.f32 %v654, %v653
    %v656 = vmul.f32 %v650, %v544
    %v657 = vadd.f32 %v655, %v656
    %s658 = smul.u32 3, 3
    %s659 = smul.addr %s658, 8
    %s660 = scalar_lea.vmem [#allocation2], %s659
    %v661 = vld [vmem:[%s660] sm:$0xff]
    %v662 = vld [vmem:[%s660 + $0x8] sm:$0xff]
    %v663 = vld [vmem:[%s660 + $0x10] sm:$0xff]
    %664 = vmatpush.msra.mxu0 %v315
    %665 = vmatpush.msra.mxu0 %v312
    %666 = vmatpush.msra.mxu0 %v309
    %667 = vmatpush.msra.mxu0 %v306
    %668 = vmatpush.msra.mxu0 %v303
    %669 = vmatpush.msra.mxu0 %v300
    %670 = vmatpush.msra.mxu0 %v297
    %671 = vmatpush.msra.mxu0 %v294
    %672 = vmatpush.msra.mxu0 %v291
    %673 = vmatpush.msra.mxu0 %v288
    %674 = vmatpush.msra.mxu0 %v285
    %675 = vmatpush.msra.mxu0 %v282
    %676 = vmatpush.msra.mxu0 %v279
    %677 = vmatpush.msra.mxu0 %v276
    %678 = vmatpush.msra.mxu0 %v273
    %679 = vmatpush.msra.mxu0 %v270
    %680 = vmatmul.f32.gmra.mxu0 %v657
    %v681 = vpop.f32.mrf.mxu0
    %v682 = vadd.f32 %v319, %v681
    %683 = vdwg.mxu0
    %684 = vmatpush.msra.mxu0 %v316
    %685 = vmatpush.msra.mxu0 %v313
    %686 = vmatpush.msra.mxu0 %v310
    %687 = vmatpush.msra.mxu0 %v307
    %688 = vmatpush.msra.mxu0 %v304
    %689 = vmatpush.msra.mxu0 %v301
    %690 = vmatpush.msra.mxu0 %v298
    %691 = vmatpush.msra.mxu0 %v295
    %692 = vmatpush.msra.mxu0 %v292
    %693 = vmatpush.msra.mxu0 %v289
    %694 = vmatpush.msra.mxu0 %v286
    %695 = vmatpush.msra.mxu0 %v283
    %696 = vmatpush.msra.mxu0 %v280
    %697 = vmatpush.msra.mxu0 %v277
    %698 = vmatpush.msra.mxu0 %v274
    %699 = vmatpush.msra.mxu0 %v271
    %700 = vmatmul.f32.gmra.mxu0 %v657
    %v701 = vpop.f32.mrf.mxu0
    %v702 = vadd.f32 %v320, %v701
    %703 = vdwg.mxu0
    %704 = vmatpush.msra.mxu0 %v317
    %705 = vmatpush.msra.mxu0 %v314
    %706 = vmatpush.msra.mxu0 %v311
    %707 = vmatpush.msra.mxu0 %v308
    %708 = vmatpush.msra.mxu0 %v305
    %709 = vmatpush.msra.mxu0 %v302
    %710 = vmatpush.msra.mxu0 %v299
    %711 = vmatpush.msra.mxu0 %v296
    %712 = vmatpush.msra.mxu0 %v293
    %713 = vmatpush.msra.mxu0 %v290
    %714 = vmatpush.msra.mxu0 %v287
    %715 = vmatpush.msra.mxu0 %v284
    %716 = vmatpush.msra.mxu0 %v281
    %717 = vmatpush.msra.mxu0 %v278
    %718 = vmatpush.msra.mxu0 %v275
    %719 = vmatpush.msra.mxu0 %v272
    %720 = vmatmul.f32.gmra.mxu0 %v657
    %v721 = vpop.f32.mrf.mxu0
    %v722 = vadd.f32 %v321, %v721
    %723 = vdwg.mxu0
    %v724 = vadd.f32 %v661, %v682
    %v725 = vxor.u32 %v724, 2147483648
    %v726 = vmul.f32 %v725, 1.442695
    %v727 = vpow.pop %v726
    %v728 = vadd.f32 %v727, 1.0
    %v729 = vrcp.pop %v728
    %v730 = vmul.f32 %v728, %v729
    %v731 = vsub.f32 1.0, %v730
    %v732 = vmul.f32 %v729, %v731
    %v733 = vadd.f32 %v729, %v732
    %vm734 = vweird.f32 %v728
    %vm735 = vweird.f32 %v729
    %vm736 = vmor %vm734, %vm735
    %v737 = vsel %vm736, %v729, %v733
    %v738 = vand.u32 2147483647, %v728
    %vm739 = vcmp.eq.f32.partialorder %v738, 8.507059e+37
    %v740 = vand.u32 %v728, 2147483648
    %v741 = vor.u32 1.1754944e-38, %v740
    %v742 = vsel %vm739, %v741, %v737
    %v743 = vmul.f32 1.0, %v742
    %v744 = vadd.f32 %v662, %v702
    %v745 = vxor.u32 %v744, 2147483648
    %v746 = vmul.f32 %v745, 1.442695
    %v747 = vpow.pop %v746
    %v748 = vadd.f32 %v747, 1.0
    %v749 = vrcp.pop %v748
    %v750 = vmul.f32 %v748, %v749
    %v751 = vsub.f32 1.0, %v750
    %v752 = vmul.f32 %v749, %v751
    %v753 = vadd.f32 %v749, %v752
    %vm754 = vweird.f32 %v748
    %vm755 = vweird.f32 %v749
    %vm756 = vmor %vm754, %vm755
    %v757 = vsel %vm756, %v749, %v753
    %v758 = vand.u32 2147483647, %v748
    %vm759 = vcmp.eq.f32.partialorder %v758, 8.507059e+37
    %v760 = vand.u32 %v748, 2147483648
    %v761 = vor.u32 1.1754944e-38, %v760
    %v762 = vsel %vm759, %v761, %v757
    %v763 = vmul.f32 1.0, %v762
    %v764 = vmul.f32 %v743, %v722
    %v765 = vadd.f32 %v663, %v764
    %v766 = vtanh.pop %v765
    %v767 = vsub.f32 1.0, %v763
    %v768 = vmul.f32 %v767, %v766
    %v769 = vmul.f32 %v763, %v657
    %v770 = vadd.f32 %v768, %v769
    %s771 = smul.u32 4, 3
    %s772 = smul.addr %s771, 8
    %s773 = scalar_lea.vmem [#allocation2], %s772
    %v774 = vld [vmem:[%s773] sm:$0xff]
    %v775 = vld [vmem:[%s773 + $0x8] sm:$0xff]
    %v776 = vld [vmem:[%s773 + $0x10] sm:$0xff]
    %777 = vmatpush.msra.mxu0 %v315
    %778 = vmatpush.msra.mxu0 %v312
    %779 = vmatpush.msra.mxu0 %v309
    %780 = vmatpush.msra.mxu0 %v306
    %781 = vmatpush.msra.mxu0 %v303
    %782 = vmatpush.msra.mxu0 %v300
    %783 = vmatpush.msra.mxu0 %v297
    %784 = vmatpush.msra.mxu0 %v294
    %785 = vmatpush.msra.mxu0 %v291
    %786 = vmatpush.msra.mxu0 %v288
    %787 = vmatpush.msra.mxu0 %v285
    %788 = vmatpush.msra.mxu0 %v282
    %789 = vmatpush.msra.mxu0 %v279
    %790 = vmatpush.msra.mxu0 %v276
    %791 = vmatpush.msra.mxu0 %v273
    %792 = vmatpush.msra.mxu0 %v270
    %793 = vmatmul.f32.gmra.mxu0 %v770
    %v794 = vpop.f32.mrf.mxu0
    %v795 = vadd.f32 %v319, %v794
    %796 = vdwg.mxu0
    %797 = vmatpush.msra.mxu0 %v316
    %798 = vmatpush.msra.mxu0 %v313
    %799 = vmatpush.msra.mxu0 %v310
    %800 = vmatpush.msra.mxu0 %v307
    %801 = vmatpush.msra.mxu0 %v304
    %802 = vmatpush.msra.mxu0 %v301
    %803 = vmatpush.msra.mxu0 %v298
    %804 = vmatpush.msra.mxu0 %v295
    %805 = vmatpush.msra.mxu0 %v292
    %806 = vmatpush.msra.mxu0 %v289
    %807 = vmatpush.msra.mxu0 %v286
    %808 = vmatpush.msra.mxu0 %v283
    %809 = vmatpush.msra.mxu0 %v280
    %810 = vmatpush.msra.mxu0 %v277
    %811 = vmatpush.msra.mxu0 %v274
    %812 = vmatpush.msra.mxu0 %v271
    %813 = vmatmul.f32.gmra.mxu0 %v770
    %v814 = vpop.f32.mrf.mxu0
    %v815 = vadd.f32 %v320, %v814
    %816 = vdwg.mxu0
    %817 = vmatpush.msra.mxu0 %v317
    %818 = vmatpush.msra.mxu0 %v314
    %819 = vmatpush.msra.mxu0 %v311
    %820 = vmatpush.msra.mxu0 %v308
    %821 = vmatpush.msra.mxu0 %v305
    %822 = vmatpush.msra.mxu0 %v302
    %823 = vmatpush.msra.mxu0 %v299
    %824 = vmatpush.msra.mxu0 %v296
    %825 = vmatpush.msra.mxu0 %v293
    %826 = vmatpush.msra.mxu0 %v290
    %827 = vmatpush.msra.mxu0 %v287
    %828 = vmatpush.msra.mxu0 %v284
    %829 = vmatpush.msra.mxu0 %v281
    %830 = vmatpush.msra.mxu0 %v278
    %831 = vmatpush.msra.mxu0 %v275
    %832 = vmatpush.msra.mxu0 %v272
    %833 = vmatmul.f32.gmra.mxu0 %v770
    %v834 = vpop.f32.mrf.mxu0
    %v835 = vadd.f32 %v321, %v834
    %836 = vdwg.mxu0
    %v837 = vadd.f32 %v774, %v795
    %v838 = vxor.u32 %v837, 2147483648
    %v839 = vmul.f32 %v838, 1.442695
    %v840 = vpow.pop %v839
    %v841 = vadd.f32 %v840, 1.0
    %v842 = vrcp.pop %v841
    %v843 = vmul.f32 %v841, %v842
    %v844 = vsub.f32 1.0, %v843
    %v845 = vmul.f32 %v842, %v844
    %v846 = vadd.f32 %v842, %v845
    %vm847 = vweird.f32 %v841
    %vm848 = vweird.f32 %v842
    %vm849 = vmor %vm847, %vm848
    %v850 = vsel %vm849, %v842, %v846
    %v851 = vand.u32 2147483647, %v841
    %vm852 = vcmp.eq.f32.partialorder %v851, 8.507059e+37
    %v853 = vand.u32 %v841, 2147483648
    %v854 = vor.u32 1.1754944e-38, %v853
    %v855 = vsel %vm852, %v854, %v850
    %v856 = vmul.f32 1.0, %v855
    %v857 = vadd.f32 %v775, %v815
    %v858 = vxor.u32 %v857, 2147483648
    %v859 = vmul.f32 %v858, 1.442695
    %v860 = vpow.pop %v859
    %v861 = vadd.f32 %v860, 1.0
    %v862 = vrcp.pop %v861
    %v863 = vmul.f32 %v861, %v862
    %v864 = vsub.f32 1.0, %v863
    %v865 = vmul.f32 %v862, %v864
    %v866 = vadd.f32 %v862, %v865
    %vm867 = vweird.f32 %v861
    %vm868 = vweird.f32 %v862
    %vm869 = vmor %vm867, %vm868
    %v870 = vsel %vm869, %v862, %v866
    %v871 = vand.u32 2147483647, %v861
    %vm872 = vcmp.eq.f32.partialorder %v871, 8.507059e+37
    %v873 = vand.u32 %v861, 2147483648
    %v874 = vor.u32 1.1754944e-38, %v873
    %v875 = vsel %vm872, %v874, %v870
    %v876 = vmul.f32 1.0, %v875
    %v877 = vmul.f32 %v856, %v835
    %v878 = vadd.f32 %v776, %v877
    %v879 = vtanh.pop %v878
    %v880 = vsub.f32 1.0, %v876
    %v881 = vmul.f32 %v880, %v879
    %v882 = vmul.f32 %v876, %v770
    %v883 = vadd.f32 %v881, %v882
    %s884 = smul.u32 5, 3
    %s885 = smul.addr %s884, 8
    %s886 = scalar_lea.vmem [#allocation2], %s885
    %v887 = vld [vmem:[%s886] sm:$0xff]
    %v888 = vld [vmem:[%s886 + $0x8] sm:$0xff]
    %v889 = vld [vmem:[%s886 + $0x10] sm:$0xff]
    %890 = vmatpush.msra.mxu0 %v315
    %891 = vmatpush.msra.mxu0 %v312
    %892 = vmatpush.msra.mxu0 %v309
    %893 = vmatpush.msra.mxu0 %v306
    %894 = vmatpush.msra.mxu0 %v303
    %895 = vmatpush.msra.mxu0 %v300
    %896 = vmatpush.msra.mxu0 %v297
    %897 = vmatpush.msra.mxu0 %v294
    %898 = vmatpush.msra.mxu0 %v291
    %899 = vmatpush.msra.mxu0 %v288
    %900 = vmatpush.msra.mxu0 %v285
    %901 = vmatpush.msra.mxu0 %v282
    %902 = vmatpush.msra.mxu0 %v279
    %903 = vmatpush.msra.mxu0 %v276
    %904 = vmatpush.msra.mxu0 %v273
    %905 = vmatpush.msra.mxu0 %v270
    %906 = vmatmul.f32.gmra.mxu0 %v883
    %v907 = vpop.f32.mrf.mxu0
    %v908 = vadd.f32 %v319, %v907
    %909 = vdwg.mxu0
    %910 = vmatpush.msra.mxu0 %v316
    %911 = vmatpush.msra.mxu0 %v313
    %912 = vmatpush.msra.mxu0 %v310
    %913 = vmatpush.msra.mxu0 %v307
    %914 = vmatpush.msra.mxu0 %v304
    %915 = vmatpush.msra.mxu0 %v301
    %916 = vmatpush.msra.mxu0 %v298
    %917 = vmatpush.msra.mxu0 %v295
    %918 = vmatpush.msra.mxu0 %v292
    %919 = vmatpush.msra.mxu0 %v289
    %920 = vmatpush.msra.mxu0 %v286
    %921 = vmatpush.msra.mxu0 %v283
    %922 = vmatpush.msra.mxu0 %v280
    %923 = vmatpush.msra.mxu0 %v277
    %924 = vmatpush.msra.mxu0 %v274
    %925 = vmatpush.msra.mxu0 %v271
    %926 = vmatmul.f32.gmra.mxu0 %v883
    %v927 = vpop.f32.mrf.mxu0
    %v928 = vadd.f32 %v320, %v927
    %929 = vdwg.mxu0
    %930 = vmatpush.msra.mxu0 %v317
    %931 = vmatpush.msra.mxu0 %v314
    %932 = vmatpush.msra.mxu0 %v311
    %933 = vmatpush.msra.mxu0 %v308
    %934 = vmatpush.msra.mxu0 %v305
    %935 = vmatpush.msra.mxu0 %v302
    %936 = vmatpush.msra.mxu0 %v299
    %937 = vmatpush.msra.mxu0 %v296
    %938 = vmatpush.msra.mxu0 %v293
    %939 = vmatpush.msra.mxu0 %v290
    %940 = vmatpush.msra.mxu0 %v287
    %941 = vmatpush.msra.mxu0 %v284
    %942 = vmatpush.msra.mxu0 %v281
    %943 = vmatpush.msra.mxu0 %v278
    %944 = vmatpush.msra.mxu0 %v275
    %945 = vmatpush.msra.mxu0 %v272
    %946 = vmatmul.f32.gmra.mxu0 %v883
    %v947 = vpop.f32.mrf.mxu0
    %v948 = vadd.f32 %v321, %v947
    %949 = vdwg.mxu0
    %v950 = vadd.f32 %v887, %v908
    %v951 = vxor.u32 %v950, 2147483648
    %v952 = vmul.f32 %v951, 1.442695
    %v953 = vpow.pop %v952
    %v954 = vadd.f32 %v953, 1.0
    %v955 = vrcp.pop %v954
    %v956 = vmul.f32 %v954, %v955
    %v957 = vsub.f32 1.0, %v956
    %v958 = vmul.f32 %v955, %v957
    %v959 = vadd.f32 %v955, %v958
    %vm960 = vweird.f32 %v954
    %vm961 = vweird.f32 %v955
    %vm962 = vmor %vm960, %vm961
    %v963 = vsel %vm962, %v955, %v959
    %v964 = vand.u32 2147483647, %v954
    %vm965 = vcmp.eq.f32.partialorder %v964, 8.507059e+37
    %v966 = vand.u32 %v954, 2147483648
    %v967 = vor.u32 1.1754944e-38, %v966
    %v968 = vsel %vm965, %v967, %v963
    %v969 = vmul.f32 1.0, %v968
    %v970 = vadd.f32 %v888, %v928
    %v971 = vxor.u32 %v970, 2147483648
    %v972 = vmul.f32 %v971, 1.442695
    %v973 = vpow.pop %v972
    %v974 = vadd.f32 %v973, 1.0
    %v975 = vrcp.pop %v974
    %v976 = vmul.f32 %v974, %v975
    %v977 = vsub.f32 1.0, %v976
    %v978 = vmul.f32 %v975, %v977
    %v979 = vadd.f32 %v975, %v978
    %vm980 = vweird.f32 %v974
    %vm981 = vweird.f32 %v975
    %vm982 = vmor %vm980, %vm981
    %v983 = vsel %vm982, %v975, %v979
    %v984 = vand.u32 2147483647, %v974
    %vm985 = vcmp.eq.f32.partialorder %v984, 8.507059e+37
    %v986 = vand.u32 %v974, 2147483648
    %v987 = vor.u32 1.1754944e-38, %v986
    %v988 = vsel %vm985, %v987, %v983
    %v989 = vmul.f32 1.0, %v988
    %v990 = vmul.f32 %v969, %v948
    %v991 = vadd.f32 %v889, %v990
    %v992 = vtanh.pop %v991
    %v993 = vsub.f32 1.0, %v989
    %v994 = vmul.f32 %v993, %v992
    %v995 = vmul.f32 %v989, %v883
    %v996 = vadd.f32 %v994, %v995
    %s997 = smul.u32 6, 3
    %s998 = smul.addr %s997, 8
    %s999 = scalar_lea.vmem [#allocation2], %s998
    %v1000 = vld [vmem:[%s999] sm:$0xff]
    %v1001 = vld [vmem:[%s999 + $0x8] sm:$0xff]
    %v1002 = vld [vmem:[%s999 + $0x10] sm:$0xff]
    %1003 = vmatpush.msra.mxu0 %v315
    %1004 = vmatpush.msra.mxu0 %v312
    %1005 = vmatpush.msra.mxu0 %v309
    %1006 = vmatpush.msra.mxu0 %v306
    %1007 = vmatpush.msra.mxu0 %v303
    %1008 = vmatpush.msra.mxu0 %v300
    %1009 = vmatpush.msra.mxu0 %v297
    %1010 = vmatpush.msra.mxu0 %v294
    %1011 = vmatpush.msra.mxu0 %v291
    %1012 = vmatpush.msra.mxu0 %v288
    %1013 = vmatpush.msra.mxu0 %v285
    %1014 = vmatpush.msra.mxu0 %v282
    %1015 = vmatpush.msra.mxu0 %v279
    %1016 = vmatpush.msra.mxu0 %v276
    %1017 = vmatpush.msra.mxu0 %v273
    %1018 = vmatpush.msra.mxu0 %v270
    %1019 = vmatmul.f32.gmra.mxu0 %v996
    %v1020 = vpop.f32.mrf.mxu0
    %v1021 = vadd.f32 %v319, %v1020
    %1022 = vdwg.mxu0
    %1023 = vmatpush.msra.mxu0 %v316
    %1024 = vmatpush.msra.mxu0 %v313
    %1025 = vmatpush.msra.mxu0 %v310
    %1026 = vmatpush.msra.mxu0 %v307
    %1027 = vmatpush.msra.mxu0 %v304
    %1028 = vmatpush.msra.mxu0 %v301
    %1029 = vmatpush.msra.mxu0 %v298
    %1030 = vmatpush.msra.mxu0 %v295
    %1031 = vmatpush.msra.mxu0 %v292
    %1032 = vmatpush.msra.mxu0 %v289
    %1033 = vmatpush.msra.mxu0 %v286
    %1034 = vmatpush.msra.mxu0 %v283
    %1035 = vmatpush.msra.mxu0 %v280
    %1036 = vmatpush.msra.mxu0 %v277
    %1037 = vmatpush.msra.mxu0 %v274
    %1038 = vmatpush.msra.mxu0 %v271
    %1039 = vmatmul.f32.gmra.mxu0 %v996
    %v1040 = vpop.f32.mrf.mxu0
    %v1041 = vadd.f32 %v320, %v1040
    %1042 = vdwg.mxu0
    %1043 = vmatpush.msra.mxu0 %v317
    %1044 = vmatpush.msra.mxu0 %v314
    %1045 = vmatpush.msra.mxu0 %v311
    %1046 = vmatpush.msra.mxu0 %v308
    %1047 = vmatpush.msra.mxu0 %v305
    %1048 = vmatpush.msra.mxu0 %v302
    %1049 = vmatpush.msra.mxu0 %v299
    %1050 = vmatpush.msra.mxu0 %v296
    %1051 = vmatpush.msra.mxu0 %v293
    %1052 = vmatpush.msra.mxu0 %v290
    %1053 = vmatpush.msra.mxu0 %v287
    %1054 = vmatpush.msra.mxu0 %v284
    %1055 = vmatpush.msra.mxu0 %v281
    %1056 = vmatpush.msra.mxu0 %v278
    %1057 = vmatpush.msra.mxu0 %v275
    %1058 = vmatpush.msra.mxu0 %v272
    %1059 = vmatmul.f32.gmra.mxu0 %v996
    %v1060 = vpop.f32.mrf.mxu0
    %v1061 = vadd.f32 %v321, %v1060
    %1062 = vdwg.mxu0
    %v1063 = vadd.f32 %v1000, %v1021
    %v1064 = vxor.u32 %v1063, 2147483648
    %v1065 = vmul.f32 %v1064, 1.442695
    %v1066 = vpow.pop %v1065
    %v1067 = vadd.f32 %v1066, 1.0
    %v1068 = vrcp.pop %v1067
    %v1069 = vmul.f32 %v1067, %v1068
    %v1070 = vsub.f32 1.0, %v1069
    %v1071 = vmul.f32 %v1068, %v1070
    %v1072 = vadd.f32 %v1068, %v1071
    %vm1073 = vweird.f32 %v1067
    %vm1074 = vweird.f32 %v1068
    %vm1075 = vmor %vm1073, %vm1074
    %v1076 = vsel %vm1075, %v1068, %v1072
    %v1077 = vand.u32 2147483647, %v1067
    %vm1078 = vcmp.eq.f32.partialorder %v1077, 8.507059e+37
    %v1079 = vand.u32 %v1067, 2147483648
    %v1080 = vor.u32 1.1754944e-38, %v1079
    %v1081 = vsel %vm1078, %v1080, %v1076
    %v1082 = vmul.f32 1.0, %v1081
    %v1083 = vadd.f32 %v1001, %v1041
    %v1084 = vxor.u32 %v1083, 2147483648
    %v1085 = vmul.f32 %v1084, 1.442695
    %v1086 = vpow.pop %v1085
    %v1087 = vadd.f32 %v1086, 1.0
    %v1088 = vrcp.pop %v1087
    %v1089 = vmul.f32 %v1087, %v1088
    %v1090 = vsub.f32 1.0, %v1089
    %v1091 = vmul.f32 %v1088, %v1090
    %v1092 = vadd.f32 %v1088, %v1091
    %vm1093 = vweird.f32 %v1087
    %vm1094 = vweird.f32 %v1088
    %vm1095 = vmor %vm1093, %vm1094
    %v1096 = vsel %vm1095, %v1088, %v1092
    %v1097 = vand.u32 2147483647, %v1087
    %vm1098 = vcmp.eq.f32.partialorder %v1097, 8.507059e+37
    %v1099 = vand.u32 %v1087, 2147483648
    %v1100 = vor.u32 1.1754944e-38, %v1099
    %v1101 = vsel %vm1098, %v1100, %v1096
    %v1102 = vmul.f32 1.0, %v1101
    %v1103 = vmul.f32 %v1082, %v1061
    %v1104 = vadd.f32 %v1002, %v1103
    %v1105 = vtanh.pop %v1104
    %v1106 = vsub.f32 1.0, %v1102
    %v1107 = vmul.f32 %v1106, %v1105
    %v1108 = vmul.f32 %v1102, %v996
    %v1109 = vadd.f32 %v1107, %v1108
    %s1110 = smul.u32 7, 3
    %s1111 = smul.addr %s1110, 8
    %s1112 = scalar_lea.vmem [#allocation2], %s1111
    %v1113 = vld [vmem:[%s1112] sm:$0xff]
    %v1114 = vld [vmem:[%s1112 + $0x8] sm:$0xff]
    %v1115 = vld [vmem:[%s1112 + $0x10] sm:$0xff]
    %1116 = vmatpush.msra.mxu0 %v315
    %1117 = vmatpush.msra.mxu0 %v312
    %1118 = vmatpush.msra.mxu0 %v309
    %1119 = vmatpush.msra.mxu0 %v306
    %1120 = vmatpush.msra.mxu0 %v303
    %1121 = vmatpush.msra.mxu0 %v300
    %1122 = vmatpush.msra.mxu0 %v297
    %1123 = vmatpush.msra.mxu0 %v294
    %1124 = vmatpush.msra.mxu0 %v291
    %1125 = vmatpush.msra.mxu0 %v288
    %1126 = vmatpush.msra.mxu0 %v285
    %1127 = vmatpush.msra.mxu0 %v282
    %1128 = vmatpush.msra.mxu0 %v279
    %1129 = vmatpush.msra.mxu0 %v276
    %1130 = vmatpush.msra.mxu0 %v273
    %1131 = vmatpush.msra.mxu0 %v270
    %1132 = vmatmul.f32.gmra.mxu0 %v1109
    %v1133 = vpop.f32.mrf.mxu0
    %v1134 = vadd.f32 %v319, %v1133
    %1135 = vdwg.mxu0
    %1136 = vmatpush.msra.mxu0 %v316
    %1137 = vmatpush.msra.mxu0 %v313
    %1138 = vmatpush.msra.mxu0 %v310
    %1139 = vmatpush.msra.mxu0 %v307
    %1140 = vmatpush.msra.mxu0 %v304
    %1141 = vmatpush.msra.mxu0 %v301
    %1142 = vmatpush.msra.mxu0 %v298
    %1143 = vmatpush.msra.mxu0 %v295
    %1144 = vmatpush.msra.mxu0 %v292
    %1145 = vmatpush.msra.mxu0 %v289
    %1146 = vmatpush.msra.mxu0 %v286
    %1147 = vmatpush.msra.mxu0 %v283
    %1148 = vmatpush.msra.mxu0 %v280
    %1149 = vmatpush.msra.mxu0 %v277
    %1150 = vmatpush.msra.mxu0 %v274
    %1151 = vmatpush.msra.mxu0 %v271
    %1152 = vmatmul.f32.gmra.mxu0 %v1109
    %v1153 = vpop.f32.mrf.mxu0
    %v1154 = vadd.f32 %v320, %v1153
    %1155 = vdwg.mxu0
    %1156 = vmatpush.msra.mxu0 %v317
    %1157 = vmatpush.msra.mxu0 %v314
    %1158 = vmatpush.msra.mxu0 %v311
    %1159 = vmatpush.msra.mxu0 %v308
    %1160 = vmatpush.msra.mxu0 %v305
    %1161 = vmatpush.msra.mxu0 %v302
    %1162 = vmatpush.msra.mxu0 %v299
    %1163 = vmatpush.msra.mxu0 %v296
    %1164 = vmatpush.msra.mxu0 %v293
    %1165 = vmatpush.msra.mxu0 %v290
    %1166 = vmatpush.msra.mxu0 %v287
    %1167 = vmatpush.msra.mxu0 %v284
    %1168 = vmatpush.msra.mxu0 %v281
    %1169 = vmatpush.msra.mxu0 %v278
    %1170 = vmatpush.msra.mxu0 %v275
    %1171 = vmatpush.msra.mxu0 %v272
    %1172 = vmatmul.f32.gmra.mxu0 %v1109
    %v1173 = vpop.f32.mrf.mxu0
    %v1174 = vadd.f32 %v321, %v1173
    %1175 = vdwg.mxu0
    %v1176 = vadd.f32 %v1113, %v1134
    %v1177 = vxor.u32 %v1176, 2147483648
    %v1178 = vmul.f32 %v1177, 1.442695
    %v1179 = vpow.pop %v1178
    %v1180 = vadd.f32 %v1179, 1.0
    %v1181 = vrcp.pop %v1180
    %v1182 = vmul.f32 %v1180, %v1181
    %v1183 = vsub.f32 1.0, %v1182
    %v1184 = vmul.f32 %v1181, %v1183
    %v1185 = vadd.f32 %v1181, %v1184
    %vm1186 = vweird.f32 %v1180
    %vm1187 = vweird.f32 %v1181
    %vm1188 = vmor %vm1186, %vm1187
    %v1189 = vsel %vm1188, %v1181, %v1185
    %v1190 = vand.u32 2147483647, %v1180
    %vm1191 = vcmp.eq.f32.partialorder %v1190, 8.507059e+37
    %v1192 = vand.u32 %v1180, 2147483648
    %v1193 = vor.u32 1.1754944e-38, %v1192
    %v1194 = vsel %vm1191, %v1193, %v1189
    %v1195 = vmul.f32 1.0, %v1194
    %v1196 = vadd.f32 %v1114, %v1154
    %v1197 = vxor.u32 %v1196, 2147483648
    %v1198 = vmul.f32 %v1197, 1.442695
    %v1199 = vpow.pop %v1198
    %v1200 = vadd.f32 %v1199, 1.0
    %v1201 = vrcp.pop %v1200
    %v1202 = vmul.f32 %v1200, %v1201
    %v1203 = vsub.f32 1.0, %v1202
    %v1204 = vmul.f32 %v1201, %v1203
    %v1205 = vadd.f32 %v1201, %v1204
    %vm1206 = vweird.f32 %v1200
    %vm1207 = vweird.f32 %v1201
    %vm1208 = vmor %vm1206, %vm1207
    %v1209 = vsel %vm1208, %v1201, %v1205
    %v1210 = vand.u32 2147483647, %v1200
    %vm1211 = vcmp.eq.f32.partialorder %v1210, 8.507059e+37
    %v1212 = vand.u32 %v1200, 2147483648
    %v1213 = vor.u32 1.1754944e-38, %v1212
    %v1214 = vsel %vm1211, %v1213, %v1209
    %v1215 = vmul.f32 1.0, %v1214
    %v1216 = vmul.f32 %v1195, %v1174
    %v1217 = vadd.f32 %v1115, %v1216
    %v1218 = vtanh.pop %v1217
    %v1219 = vsub.f32 1.0, %v1215
    %v1220 = vmul.f32 %v1219, %v1218
    %v1221 = vmul.f32 %v1215, %v1109
    %v1222 = vadd.f32 %v1220, %v1221
    %1223 = vst [vmem:[%s5] sm:$0xff] %v1222
    // Predicated region
    $region30: #{rnn_context_encoder.1} parent=1 // pred_check
      _
    $region31: #{rnn_context_encoder.1} parent=1 // pred_check_branch
      %1225 = sbr.rel (0) target = $region33
    $region32: #{rnn_context_encoder.1} parent=1 // pred_region
      _
    $region33: #{rnn_context_encoder.1} parent=1 // pred_fallthru
      _
    // Predicated region
    $region34: #{rnn_context_encoder.1} parent=1 // pred_check
      _
    $region35: #{rnn_context_encoder.1} parent=1 // pred_check_branch
      %1227 = sbr.rel (0) target = $region37
    $region36: #{rnn_context_encoder.1} parent=1 // pred_region
      _
    $region37: #{rnn_context_encoder.1} parent=1 // pred_fallthru
      _
    %1228 = vsyncpa [#allocation4], 1
    %1229 = vsyncpa [#allocation6], 1

</llo_original>
